<compile_context>
chip_gen: v5e
topology: v5e:2x2
jax: 0.10.0
libtpu: 0.0.40
codegen_flags: <defaults>
</compile_context>

<pallas_src>
import math
import jax
import jax.numpy as jnp
from jax.experimental import pallas as pl
from jax.experimental.pallas import tpu as pltpu

NUM_HEADING_BIN = 12
NUM_SIZE_CLUSTER = 8

# ---- packed small-tensor column layout (per object, f32) ----
_OFF_PC = 0                       # predicted box3d_center        (3)
_OFF_S1 = 3                       # stage1_center                 (3)
_OFF_TC = 6                       # target box3d_center           (3)
_OFF_HS = 9                       # heading_scores                (12)
_OFF_HRN = 21                     # heading_residual_normalized   (12)
_OFF_HR = 33                      # heading_residual              (12)
_OFF_SS = 45                      # size_scores                   (8)
_OFF_SRN = 53                     # size_residual_normalized flat (24)
_OFF_SRP = 77                     # size_residual (pred) flat     (24)
_OFF_AC = 101                     # angle_class (as f32)          (1)
_OFF_AR = 102                     # angle_residual                (1)
_OFF_SZC = 103                    # size_class (as f32)           (1)
_OFF_SRT = 104                    # target size_residual          (3)
_OFF_MASK = 107                   # valid mask (0/1)              (1)
_PACK_USED = 108
_PACK_W = 128                     # lane-padded width

# ---- lane layout inside the per-object VMEM accumulator (TM, 128) ----
_A_MASK = 0
_A_CENTER = 1
_A_STAGE1 = 2
_A_HCLS = 3
_A_SCLS = 4
_A_HRES = 5
_A_SRES = 8                       # 3 lanes
_A_CORN = 16                      # 8 lanes


def _huber_elem(e):
    # elementwise Huber, delta = 1.0 (reduction applied by caller)
    a = jnp.abs(e)
    q = jnp.minimum(a, 1.0)
    return 0.5 * q * q + (a - q)


def _vmem_limit_bytes():
    """Per-generation scoped-VMEM limit: <= half of physical VMEM."""
    phys = 64 * 1024 * 1024          # conservative default (v7x per-core VMEM)
    try:
        info = pltpu.get_tpu_info()
        cap = getattr(info, "vmem_capacity_bytes", None)
        if cap:
            phys = int(cap)
    except Exception:
        pass
    # 32 MiB on v7x (64 MiB parts), 64 MiB on v5e/v6e (128 MiB parts).
    return int(min(phys // 2, 64 * 1024 * 1024))


def _frustum_loss_kernel(d_ref, seg_ref, pk_ref, out_ref, acc_seg_ref, acc_obj_ref):
    """One grid step processes TM objects.

    d_ref       : (TM, P)   f32   logit difference x1 - x0 (binary seg)
    seg_ref     : (TM, P)   int8  point labels (0/1)
    pk_ref      : (TM, 128) f32   packed per-object tensors (layout above)
    out_ref     : (16,)     f32   SMEM output (written on last grid step)
    acc_seg_ref : (TM, P)   f32   VMEM accumulator (masked per-point CE)
    acc_obj_ref : (TM, 128) f32   VMEM accumulator (masked per-object terms)
    """
    f32 = jnp.float32
    step = pl.program_id(0)
    n_steps = pl.num_programs(0)
    TM, P = d_ref.shape

    @pl.when(step == 0)
    def _():
        acc_seg_ref[...] = jnp.zeros_like(acc_seg_ref)
        acc_obj_ref[...] = jnp.zeros_like(acc_obj_ref)

    pk = pk_ref[...]                                      # (TM, 128) f32
    mask = pk[:, _OFF_MASK:_OFF_MASK + 1]                 # (TM, 1)
    maskb = mask > 0.5                                    # (TM, 1) bool

    def _masked(x):
        # where (not multiply) so garbage in partial tail blocks can't leak NaN
        return jnp.where(maskb, x, 0.0)

    # ---------- binary segmentation CE: softplus(sign * (x1 - x0)) ----------
    d = d_ref[...]                                        # (TM, P) f32
    sgn = 1.0 - 2.0 * seg_ref[...].astype(f32)            # +1 for label 0, -1 for label 1
    z = d * sgn
    ce_seg = jnp.maximum(z, 0.0) + jnp.log(1.0 + jnp.exp(-jnp.abs(z)))
    acc_seg_ref[...] += _masked(ce_seg)                   # VPU adds only

    # ---------- unpack small per-object tensors ----------
    pc = pk[:, _OFF_PC:_OFF_PC + 3]
    s1 = pk[:, _OFF_S1:_OFF_S1 + 3]
    tc = pk[:, _OFF_TC:_OFF_TC + 3]
    hs = pk[:, _OFF_HS:_OFF_HS + NUM_HEADING_BIN]
    hrn = pk[:, _OFF_HRN:_OFF_HRN + NUM_HEADING_BIN]
    hr = pk[:, _OFF_HR:_OFF_HR + NUM_HEADING_BIN]
    ss = pk[:, _OFF_SS:_OFF_SS + NUM_SIZE_CLUSTER]
    srn = pk[:, _OFF_SRN:_OFF_SRN + NUM_SIZE_CLUSTER * 3]
    srp = pk[:, _OFF_SRP:_OFF_SRP + NUM_SIZE_CLUSTER * 3]
    ac = pk[:, _OFF_AC:_OFF_AC + 1]                       # angle class (f32, exact small int)
    ar = pk[:, _OFF_AR:_OFF_AR + 1]                       # angle residual
    szc = pk[:, _OFF_SZC:_OFF_SZC + 1]                    # size class (f32)
    srt = pk[:, _OFF_SRT:_OFF_SRT + 3]                    # target size residual

    # ---------- center / stage1-center losses ----------
    dc = pc - tc
    center_norm = jnp.sqrt(jnp.sum(dc * dc, axis=-1, keepdims=True))
    d1 = s1 - tc
    stage1_norm = jnp.sqrt(jnp.sum(d1 * d1, axis=-1, keepdims=True))

    # ---------- heading class CE (label smoothing 0.1) ----------
    NH = NUM_HEADING_BIN
    iota_h = jax.lax.broadcasted_iota(jnp.int32, (TM, NH), 1).astype(f32)
    onehot_h = (iota_h == ac).astype(f32)                 # (TM, NH)
    mh = jnp.max(hs, axis=-1, keepdims=True)
    lse_h = mh + jnp.log(jnp.sum(jnp.exp(hs - mh), axis=-1, keepdims=True))
    x_label_h = jnp.sum(hs * onehot_h, axis=-1, keepdims=True)
    sum_hs = jnp.sum(hs, axis=-1, keepdims=True)
    eps = 0.1
    ce_h = lse_h - (1.0 - eps) * x_label_h - (eps / NH) * sum_hs

    # ---------- size class CE ----------
    NS = NUM_SIZE_CLUSTER
    iota_s = jax.lax.broadcasted_iota(jnp.int32, (TM, NS), 1).astype(f32)
    onehot_s = (iota_s == szc).astype(f32)                # (TM, NS)
    ms = jnp.max(ss, axis=-1, keepdims=True)
    lse_s = ms + jnp.log(jnp.sum(jnp.exp(ss - ms), axis=-1, keepdims=True))
    x_label_s = jnp.sum(ss * onehot_s, axis=-1, keepdims=True)
    ce_s = lse_s - x_label_s

    # ---------- heading residual huber ----------
    hr_pred = jnp.sum(hrn * onehot_h, axis=-1, keepdims=True)      # (TM,1)
    hr_label = ar / (math.pi / NUM_HEADING_BIN)
    hdiff = hr_pred - hr_label
    hdiff = jnp.where(hdiff > 0.5, hdiff - 1.0, hdiff)
    hdiff = jnp.where(hdiff < -0.5, hdiff + 1.0, hdiff)

    # ---------- gather size residuals (pred + normalized) at size_class ----------
    sr_pred = jnp.zeros((TM, 3), f32)       # from size_residual_normalized
    sp_pred = jnp.zeros((TM, 3), f32)       # from size_residual (for corners)
    for s in range(NS):
        sel = onehot_s[:, s:s + 1]                                  # (TM,1)
        sr_pred = sr_pred + sel * srn[:, 3 * s:3 * s + 3]
        sp_pred = sp_pred + sel * srp[:, 3 * s:3 * s + 3]
    sdiff = sr_pred - srt                                           # (TM,3)

    # ---------- corners loss ----------
    heading_pred = jnp.sum(hr * onehot_h, axis=-1, keepdims=True)   # (TM,1)

    idx8 = jax.lax.broadcasted_iota(jnp.int32, (1, 8), 1)
    sgn_x = jnp.where((idx8 % 4) < 2, 1.0, -1.0).astype(f32)        # + + - - + + - -
    sgn_y = jnp.where(idx8 < 4, 1.0, -1.0).astype(f32)              # + + + + - - - -
    sgn_z = jnp.where(((idx8 + 1) % 4) < 2, 1.0, -1.0).astype(f32)  # + - - + + - - +

    def corners_xyz(center, heading, sizes):
        l = sizes[:, 0:1]
        w = sizes[:, 1:2]
        h = sizes[:, 2:3]
        xc = 0.5 * l * sgn_x                                        # (TM, 8)
        yc = 0.5 * h * sgn_y
        zc = 0.5 * w * sgn_z
        c = jnp.cos(heading)                                        # (TM, 1)
        s = jnp.sin(heading)
        px = c * xc + s * zc + center[:, 0:1]
        py = yc + center[:, 1:2]
        pz = -s * xc + c * zc + center[:, 2:3]
        return px, py, pz

    ppx, ppy, ppz = corners_xyz(pc, heading_pred, sp_pred)
    gpx, gpy, gpz = corners_xyz(tc, ar, srt)
    corner_h = (_huber_elem(ppx - gpx) + _huber_elem(ppy - gpy)
                + _huber_elem(ppz - gpz))                           # (TM, 8)

    # ---------- accumulate masked per-object columns (VPU adds only) ----------
    acc_obj_ref[:, _A_MASK:_A_MASK + 1] += maskb.astype(f32)
    acc_obj_ref[:, _A_CENTER:_A_CENTER + 1] += _masked(center_norm)
    acc_obj_ref[:, _A_STAGE1:_A_STAGE1 + 1] += _masked(stage1_norm)
    acc_obj_ref[:, _A_HCLS:_A_HCLS + 1] += _masked(ce_h)
    acc_obj_ref[:, _A_SCLS:_A_SCLS + 1] += _masked(ce_s)
    acc_obj_ref[:, _A_HRES:_A_HRES + 1] += _masked(_huber_elem(hdiff))
    acc_obj_ref[:, _A_SRES:_A_SRES + 3] += _masked(_huber_elem(sdiff))
    acc_obj_ref[:, _A_CORN:_A_CORN + 8] += _masked(corner_h)

    # ---------- finalize: XLU reduces + scalar stores, last step only ----------
    @pl.when(step == n_steps - 1)
    def _():
        acc = acc_obj_ref[...]
        # NOTE: max(n_valid, 1) intentionally avoids NaN for an all-zero mask
        # (PyTorch would produce NaN/inf here).
        n_valid = jnp.maximum(jnp.sum(acc[:, _A_MASK:_A_MASK + 1]), 1.0)
        inv_valid = 1.0 / n_valid
        seg_loss = jnp.sum(acc_seg_ref[...]) * (inv_valid / float(P))
        center_loss = jnp.sum(acc[:, _A_CENTER:_A_CENTER + 1]) * inv_valid
        stage1_center_loss = jnp.sum(acc[:, _A_STAGE1:_A_STAGE1 + 1]) * inv_valid
        heading_class_loss = jnp.sum(acc[:, _A_HCLS:_A_HCLS + 1]) * inv_valid
        size_class_loss = jnp.sum(acc[:, _A_SCLS:_A_SCLS + 1]) * inv_valid
        heading_res_loss = jnp.sum(acc[:, _A_HRES:_A_HRES + 1]) * inv_valid
        size_res_loss = jnp.sum(acc[:, _A_SRES:_A_SRES + 3]) * (inv_valid / 3.0)
        corners_loss = jnp.sum(acc[:, _A_CORN:_A_CORN + 8]) * (inv_valid / 24.0)

        total = (seg_loss + 0.5 * center_loss + stage1_center_loss
                 + heading_class_loss + size_class_loss
                 + 10.0 * heading_res_loss + 20.0 * size_res_loss
                 + corners_loss)

        out_ref[0] = total
        out_ref[1] = seg_loss
        out_ref[2] = center_loss
        out_ref[3] = heading_class_loss
        out_ref[4] = size_class_loss
        out_ref[5] = heading_res_loss
        out_ref[6] = size_res_loss
        out_ref[7] = stage1_center_loss
        out_ref[8] = corners_loss
        for k in range(9, 16):
            out_ref[k] = jnp.float32(0.0)


def frustum_pointnet_loss(predictions, targets, valid_mask=None):
    """JAX/Pallas equivalent of FrustumPointNetLoss.forward (no prints/asserts)."""
    logits = predictions['logits']
    bs, n_obj, P, C = logits.shape
    if C != 2:
        # TODO(synk): generic C-class segmentation-CE path (module is used with C == 2).
        raise NotImplementedError("Pallas kernel is specialized for binary segmentation (C == 2).")
    M = bs * n_obj
    f32 = jnp.float32
    if valid_mask is None:
        valid_mask = jnp.ones((bs, n_obj), dtype=bool)

    # ---- big point streams: no transpose, no pad, minimal bytes ----
    # C == 2 collapses per-point CE to softplus of a single logit difference.
    d = (logits[..., 1] - logits[..., 0]).reshape(M, P).astype(f32)
    seg8 = targets['seg'].reshape(M, P).astype(jnp.int8)

    # ---- pack all small per-object tensors into one lane-dense (M, 128) slab ----
    def flat(x, k):
        return x.reshape(M, k).astype(f32)

    cols = [
        flat(predictions['box3d_center'], 3),
        flat(predictions['stage1_center'], 3),
        flat(targets['box3d_center'], 3),
        flat(predictions['heading_scores'], NUM_HEADING_BIN),
        flat(predictions['heading_residual_normalized'], NUM_HEADING_BIN),
        flat(predictions['heading_residual'], NUM_HEADING_BIN),
        flat(predictions['size_scores'], NUM_SIZE_CLUSTER),
        flat(predictions['size_residual_normalized'], NUM_SIZE_CLUSTER * 3),
        flat(predictions['size_residual'], NUM_SIZE_CLUSTER * 3),
        targets['angle_class'].reshape(M, 1).astype(f32),
        targets['angle_residual'].reshape(M, 1).astype(f32),
        targets['size_class'].reshape(M, 1).astype(f32),
        flat(targets['size_residual'], 3),
        valid_mask.reshape(M, 1).astype(f32),
    ]
    packed = jnp.concatenate(cols, axis=1)                 # (M, 108)
    assert packed.shape[1] == _PACK_USED
    packed = jnp.pad(packed, ((0, 0), (0, _PACK_W - _PACK_USED)))

    # ---- tile size from a per-generation VMEM budget ----
    vmem_limit = _vmem_limit_bytes()
    if M <= 8:
        TM = M                                   # block == full sublane dim
    else:
        budget = (vmem_limit * 3) // 5           # headroom for compiler temps
        # per-row bytes: double-buffered d/seg/packed + the two VMEM
        # accumulators + a few (TM, P) f32 seg-CE temporaries.
        per_row = 26 * P + 1536
        TM = min(max(budget // per_row, 8), 1024, M)
        TM = max(8, (TM // 8) * 8)
    grid_m = int(pl.cdiv(M, TM))

    # Pad ONLY the tiny per-object slab so any tail rows carry mask == 0
    # (the big d / seg streams are never padded; tail garbage is masked
    # in-kernel with jnp.where).
    Mp = grid_m * TM
    if Mp > M:
        packed = jnp.pad(packed, ((0, Mp - M), (0, 0)))

    out = pl.pallas_call(
        _frustum_loss_kernel,
        out_shape=jax.ShapeDtypeStruct((16,), jnp.float32),
        grid_spec=pltpu.PrefetchScalarGridSpec(
            num_scalar_prefetch=0,
            grid=(grid_m,),
            in_specs=[
                pl.BlockSpec((TM, P), lambda i: (i, 0)),          # logit diff
                pl.BlockSpec((TM, P), lambda i: (i, 0)),          # seg labels (int8)
                pl.BlockSpec((TM, _PACK_W), lambda i: (i, 0)),    # packed slab
            ],
            out_specs=pl.BlockSpec((16,), lambda i: (0,),
                                   memory_space=pltpu.MemorySpace.SMEM),
            scratch_shapes=[
                pltpu.VMEM((TM, P), jnp.float32),        # seg-CE accumulator
                pltpu.VMEM((TM, _PACK_W), jnp.float32),  # per-object accumulator
            ],
        ),
        compiler_params=pltpu.CompilerParams(
            dimension_semantics=("arbitrary",),          # serial accumulation over M blocks
            vmem_limit_bytes=vmem_limit,
        ),
    )(d, seg8, packed)

    loss_dict = {
        'total_loss': out[0],
        'seg_loss': out[1],
        'center_loss': out[2],
        'heading_class_loss': out[3],
        'size_class_loss': out[4],
        'heading_residual_normalized_loss': out[5],
        'size_residual_normalized_loss': out[6],
        'stage1_center_loss': out[7],
        'corners_loss': out[8],
    }
    return out[0], loss_dict


def reference_total_loss(predictions, targets):
    """Pure-JAX reference (valid_mask all True), mirrors PyTorch semantics."""
    logits = predictions['logits']
    bs, n_obj, P, C = logits.shape
    M = bs * n_obj
    lg = logits.reshape(M, P, C)
    seg = targets['seg'].reshape(M, P)
    pc = predictions['box3d_center'].reshape(M, 3)
    s1 = predictions['stage1_center'].reshape(M, 3)
    tc = targets['box3d_center'].reshape(M, 3)
    hs = predictions['heading_scores'].reshape(M, NUM_HEADING_BIN)
    hrn = predictions['heading_residual_normalized'].reshape(M, NUM_HEADING_BIN)
    hr = predictions['heading_residual'].reshape(M, NUM_HEADING_BIN)
    ss = predictions['size_scores'].reshape(M, NUM_SIZE_CLUSTER)
    srn = predictions['size_residual_normalized'].reshape(M, NUM_SIZE_CLUSTER, 3)
    srp = predictions['size_residual'].reshape(M, NUM_SIZE_CLUSTER, 3)
    ac = targets['angle_class'].reshape(M, 1)
    ar = targets['angle_residual'].reshape(M)
    szc = targets['size_class'].reshape(M, 1)
    srt = targets['size_residual'].reshape(M, 3)

    logp = jax.nn.log_softmax(lg, axis=-1)
    seg_loss = -jnp.mean(jnp.take_along_axis(logp, seg[..., None], axis=-1))
    center_loss = jnp.mean(jnp.linalg.norm(pc - tc, axis=-1))
    stage1_loss = jnp.mean(jnp.linalg.norm(s1 - tc, axis=-1))
    eps = 0.1
    lph = jax.nn.log_softmax(hs, axis=-1)
    q = (1 - eps) * jax.nn.one_hot(ac[:, 0], NUM_HEADING_BIN) + eps / NUM_HEADING_BIN
    heading_class_loss = jnp.mean(-(q * lph).sum(-1))
    lps = jax.nn.log_softmax(ss, axis=-1)
    size_class_loss = -jnp.mean(jnp.take_along_axis(lps, szc, axis=-1))

    def huber_mean(e):
        a = jnp.abs(e)
        qd = jnp.minimum(a, 1.0)
        return jnp.mean(0.5 * qd ** 2 + (a - qd))

    hr_pred = jnp.take_along_axis(hrn, ac, axis=-1)[:, 0]
    hd = hr_pred - ar / (math.pi / NUM_HEADING_BIN)
    hd = jnp.where(hd > 0.5, hd - 1.0, hd)
    hd = jnp.where(hd < -0.5, hd + 1.0, hd)
    heading_res_loss = huber_mean(hd)
    sr_pred = jnp.take_along_axis(srn, szc[:, :, None], axis=1)[:, 0, :]
    size_res_loss = huber_mean(sr_pred - srt)

    def corners(center, heading, sizes):
        l, w, h = sizes[:, 0:1], sizes[:, 1:2], sizes[:, 2:3]
        sx = jnp.array([1, 1, -1, -1, 1, 1, -1, -1], jnp.float32)
        sy = jnp.array([1, 1, 1, 1, -1, -1, -1, -1], jnp.float32)
        sz = jnp.array([1, -1, -1, 1, 1, -1, -1, 1], jnp.float32)
        xc, yc, zc = 0.5 * l * sx, 0.5 * h * sy, 0.5 * w * sz
        c = jnp.cos(heading)[:, None]
        s = jnp.sin(heading)[:, None]
        return jnp.stack([c * xc + s * zc + center[:, 0:1],
                          yc + center[:, 1:2],
                          -s * xc + c * zc + center[:, 2:3]], axis=-1)

    hp = jnp.take_along_axis(hr, ac, axis=-1)[:, 0]
    sp = jnp.take_along_axis(srp, szc[:, :, None], axis=1)[:, 0, :]
    corners_loss = huber_mean(corners(pc, hp, sp) - corners(tc, ar, srt))
    return (seg_loss + 0.5 * center_loss + stage1_loss + heading_class_loss
            + size_class_loss + 10.0 * heading_res_loss + 20.0 * size_res_loss
            + corners_loss)


if __name__ == "__main__":
    # FrustumPointNetLoss has no learnable parameters; nothing to initialize.
    key = jax.random.PRNGKey(0)
    keys = jax.random.split(key, 16)
    bs, n_obj, P, C = 2, 4, 64, 2

    predictions = {
        'logits': jax.random.normal(keys[0], (bs, n_obj, P, C), jnp.float32),
        'box3d_center': jax.random.normal(keys[1], (bs, n_obj, 3), jnp.float32),
        'stage1_center': jax.random.normal(keys[2], (bs, n_obj, 3), jnp.float32),
        'heading_scores': jax.random.normal(keys[3], (bs, n_obj, NUM_HEADING_BIN), jnp.float32),
        'heading_residual_normalized': 0.1 * jax.random.normal(
            keys[4], (bs, n_obj, NUM_HEADING_BIN), jnp.float32),
        'heading_residual': 0.1 * jax.random.normal(
            keys[5], (bs, n_obj, NUM_HEADING_BIN), jnp.float32),
        'size_scores': jax.random.normal(keys[6], (bs, n_obj, NUM_SIZE_CLUSTER), jnp.float32),
        'size_residual_normalized': 0.1 * jax.random.normal(
            keys[7], (bs, n_obj, NUM_SIZE_CLUSTER, 3), jnp.float32),
        'size_residual': jax.random.normal(
            keys[8], (bs, n_obj, NUM_SIZE_CLUSTER, 3), jnp.float32),
    }
    targets = {
        'seg': jax.random.randint(keys[9], (bs, n_obj, P), 0, C),
        'box3d_center': jax.random.normal(keys[10], (bs, n_obj, 3), jnp.float32),
        'angle_class': jax.random.randint(keys[11], (bs, n_obj), 0, NUM_HEADING_BIN),
        'angle_residual': (math.pi / NUM_HEADING_BIN)
                          * (jax.random.uniform(keys[12], (bs, n_obj)) - 0.5),
        'size_class': jax.random.randint(keys[13], (bs, n_obj), 0, NUM_SIZE_CLUSTER),
        'size_residual': 0.2 * jax.random.normal(keys[14], (bs, n_obj, 3), jnp.float32),
    }

    total_loss, loss_dict = frustum_pointnet_loss(predictions, targets, valid_mask=None)
    total_loss = jax.block_until_ready(total_loss)

    ref_total = jax.block_until_ready(reference_total_loss(predictions, targets))
    assert jnp.isfinite(total_loss) and total_loss >= 0.0
    assert jnp.allclose(total_loss, ref_total, rtol=1e-3, atol=1e-3), (
        f"pallas={float(total_loss)} ref={float(ref_total)}")

    print("KERNEL_OK")
</pallas_src>

<mosaic_0001>
module attributes {stable_mosaic.version = 11 : i64} {
  func.func @_frustum_loss_kernel(%arg0: i32, %arg1: memref<8x64xf32, #tpu.memory_space<vmem>>, %arg2: memref<8x64xi8, #tpu.memory_space<vmem>>, %arg3: memref<8x128xf32, #tpu.memory_space<vmem>>, %arg4: memref<16xf32, #tpu.memory_space<smem>>, %arg5: memref<8x64xf32, #tpu.memory_space<vmem>>, %arg6: memref<8x128xf32, #tpu.memory_space<vmem>>) attributes {dimension_semantics = [#tpu.dimension_semantics<arbitrary>], iteration_bounds = array<i64: 1>, scalar_prefetch = 0 : i64, scratch_operands = 2 : i64, tpu.core_type = #tpu.core_type<tc>, window_params = [{transform_indices = @transform_0, window_bounds = array<i64: 8, 64>}, {transform_indices = @transform_1, window_bounds = array<i64: 8, 64>}, {transform_indices = @transform_2, window_bounds = array<i64: 8, 128>}, {transform_indices = @transform_3, window_bounds = array<i64: 16>}]} {
    %c0_i32 = arith.constant 0 : i32
    %0 = arith.cmpi eq, %arg0, %c0_i32 : i32
    %1 = arith.extui %0 : i1 to i32
    %c0_i32_0 = arith.constant 0 : i32
    %2 = arith.cmpi ne, %1, %c0_i32_0 : i32
    scf.if %2 {
      %cst_107 = arith.constant 0.000000e+00 : f32
      %418 = vector.broadcast %cst_107 : f32 to vector<8x64xf32>
      %c0_108 = arith.constant 0 : index
      %c0_109 = arith.constant 0 : index
      %419 = vector.load %arg5[%c0_108, %c0_109] : memref<8x64xf32, #tpu.memory_space<vmem>>, vector<8x64xf32>
      tpu.vector_store %arg5[%c0_108, %c0_109], %418 {strides = array<i32>} : memref<8x64xf32, #tpu.memory_space<vmem>>, vector<8x64xf32>,
      %cst_110 = arith.constant 0.000000e+00 : f32
      %420 = vector.broadcast %cst_110 : f32 to vector<8x128xf32>
      %c0_111 = arith.constant 0 : index
      %c0_112 = arith.constant 0 : index
      %421 = vector.load %arg6[%c0_111, %c0_112] : memref<8x128xf32, #tpu.memory_space<vmem>>, vector<8x128xf32>
      tpu.vector_store %arg6[%c0_111, %c0_112], %420 {strides = array<i32>} : memref<8x128xf32, #tpu.memory_space<vmem>>, vector<8x128xf32>,
    } else {
    }
    %c0 = arith.constant 0 : index
    %c0_1 = arith.constant 0 : index
    %3 = vector.load %arg3[%c0, %c0_1] : memref<8x128xf32, #tpu.memory_space<vmem>>, vector<8x128xf32>
    %4 = vector.extract_strided_slice %3 {offsets = [0, 107], sizes = [8, 1], strides = [1, 1]} : vector<8x128xf32> to vector<8x1xf32>
    %cst = arith.constant 5.000000e-01 : f32
    %5 = vector.broadcast %cst : f32 to vector<8x1xf32>
    %6 = arith.cmpf ogt, %4, %5 : vector<8x1xf32>
    %c0_2 = arith.constant 0 : index
    %c0_3 = arith.constant 0 : index
    %7 = vector.load %arg1[%c0_2, %c0_3] : memref<8x64xf32, #tpu.memory_space<vmem>>, vector<8x64xf32>
    %c0_4 = arith.constant 0 : index
    %c0_5 = arith.constant 0 : index
    %8 = vector.load %arg2[%c0_4, %c0_5] : memref<8x64xi8, #tpu.memory_space<vmem>>, vector<8x64xi8>
    %9 = arith.sitofp %8 : vector<8x64xi8> to vector<8x64xf32>
    %cst_6 = arith.constant 2.000000e+00 : f32
    %10 = vector.broadcast %cst_6 : f32 to vector<8x64xf32>
    %11 = arith.mulf %10, %9 : vector<8x64xf32>
    %cst_7 = arith.constant 1.000000e+00 : f32
    %12 = vector.broadcast %cst_7 : f32 to vector<8x64xf32>
    %13 = arith.subf %12, %11 : vector<8x64xf32>
    %14 = arith.mulf %7, %13 : vector<8x64xf32>
    %cst_8 = arith.constant 0.000000e+00 : f32
    %15 = vector.broadcast %cst_8 : f32 to vector<8x64xf32>
    %16 = arith.maximumf %14, %15 : vector<8x64xf32>
    %17 = math.absf %14 : vector<8x64xf32>
    %cst_9 = arith.constant 0.000000e+00 : f32
    %18 = vector.broadcast %cst_9 : f32 to vector<8x64xf32>
    %19 = arith.subf %18, %17 : vector<8x64xf32>
    %20 = math.exp %19 : vector<8x64xf32>
    %cst_10 = arith.constant 1.000000e+00 : f32
    %21 = vector.broadcast %cst_10 : f32 to vector<8x64xf32>
    %22 = arith.addf %21, %20 : vector<8x64xf32>
    %23 = math.log %22 : vector<8x64xf32>
    %24 = arith.addf %16, %23 : vector<8x64xf32>
    %c0_11 = arith.constant 0 : index
    %c0_12 = arith.constant 0 : index
    %25 = vector.load %arg5[%c0_11, %c0_12] : memref<8x64xf32, #tpu.memory_space<vmem>>, vector<8x64xf32>
    %cst_13 = arith.constant 0.000000e+00 : f32
    %26 = vector.shape_cast %6 : vector<8x1xi1> to vector<8x1xi1>
    %27 = vector.broadcast %26 : vector<8x1xi1> to vector<8x64xi1>
    %28 = vector.broadcast %cst_13 : f32 to vector<8x64xf32>
    %29 = arith.select %27, %24, %28 : vector<8x64xi1>, vector<8x64xf32>
    %30 = arith.addf %25, %29 : vector<8x64xf32>
    %c0_14 = arith.constant 0 : index
    %c0_15 = arith.constant 0 : index
    %31 = vector.load %arg5[%c0_14, %c0_15] : memref<8x64xf32, #tpu.memory_space<vmem>>, vector<8x64xf32>
    tpu.vector_store %arg5[%c0_14, %c0_15], %30 {strides = array<i32>} : memref<8x64xf32, #tpu.memory_space<vmem>>, vector<8x64xf32>,
    %32 = vector.extract_strided_slice %3 {offsets = [0, 0], sizes = [8, 3], strides = [1, 1]} : vector<8x128xf32> to vector<8x3xf32>
    %33 = vector.extract_strided_slice %3 {offsets = [0, 3], sizes = [8, 3], strides = [1, 1]} : vector<8x128xf32> to vector<8x3xf32>
    %34 = vector.extract_strided_slice %3 {offsets = [0, 6], sizes = [8, 3], strides = [1, 1]} : vector<8x128xf32> to vector<8x3xf32>
    %35 = vector.extract_strided_slice %3 {offsets = [0, 9], sizes = [8, 12], strides = [1, 1]} : vector<8x128xf32> to vector<8x12xf32>
    %36 = vector.extract_strided_slice %3 {offsets = [0, 21], sizes = [8, 12], strides = [1, 1]} : vector<8x128xf32> to vector<8x12xf32>
    %37 = vector.extract_strided_slice %3 {offsets = [0, 33], sizes = [8, 12], strides = [1, 1]} : vector<8x128xf32> to vector<8x12xf32>
    %38 = vector.extract_strided_slice %3 {offsets = [0, 45], sizes = [8, 8], strides = [1, 1]} : vector<8x128xf32> to vector<8x8xf32>
    %39 = vector.extract_strided_slice %3 {offsets = [0, 53], sizes = [8, 24], strides = [1, 1]} : vector<8x128xf32> to vector<8x24xf32>
    %40 = vector.extract_strided_slice %3 {offsets = [0, 77], sizes = [8, 24], strides = [1, 1]} : vector<8x128xf32> to vector<8x24xf32>
    %41 = vector.extract_strided_slice %3 {offsets = [0, 101], sizes = [8, 1], strides = [1, 1]} : vector<8x128xf32> to vector<8x1xf32>
    %42 = vector.extract_strided_slice %3 {offsets = [0, 102], sizes = [8, 1], strides = [1, 1]} : vector<8x128xf32> to vector<8x1xf32>
    %43 = vector.extract_strided_slice %3 {offsets = [0, 103], sizes = [8, 1], strides = [1, 1]} : vector<8x128xf32> to vector<8x1xf32>
    %44 = vector.extract_strided_slice %3 {offsets = [0, 104], sizes = [8, 3], strides = [1, 1]} : vector<8x128xf32> to vector<8x3xf32>
    %45 = arith.subf %32, %34 : vector<8x3xf32>
    %46 = arith.mulf %45, %45 : vector<8x3xf32>
    %cst_16 = arith.constant dense<0.000000e+00> : vector<8xf32>
    %47 = vector.multi_reduction <add>, %46, %cst_16 [1] : vector<8x3xf32> to vector<8xf32>
    %48 = vector.shape_cast %47 : vector<8xf32> to vector<8x1xf32>
    %49 = math.sqrt %48 : vector<8x1xf32>
    %50 = arith.subf %33, %34 : vector<8x3xf32>
    %51 = arith.mulf %50, %50 : vector<8x3xf32>
    %cst_17 = arith.constant dense<0.000000e+00> : vector<8xf32>
    %52 = vector.multi_reduction <add>, %51, %cst_17 [1] : vector<8x3xf32> to vector<8xf32>
    %53 = vector.shape_cast %52 : vector<8xf32> to vector<8x1xf32>
    %54 = math.sqrt %53 : vector<8x1xf32>
    %55 = tpu.iota {dimensions = array<i32: 1>} : vector<8x12xi32>
    %56 = arith.sitofp %55 : vector<8x12xi32> to vector<8x12xf32>
    %57 = vector.broadcast %41 : vector<8x1xf32> to vector<8x12xf32>
    %58 = arith.cmpf oeq, %56, %57 : vector<8x12xf32>
    %59 = arith.extui %58 : vector<8x12xi1> to vector<8x12xi32>
    %60 = arith.sitofp %59 : vector<8x12xi32> to vector<8x12xf32>
    %cst_18 = arith.constant dense<0xFF800000> : vector<8xf32>
    %61 = vector.multi_reduction <maximumf>, %35, %cst_18 [1] : vector<8x12xf32> to vector<8xf32>
    %62 = vector.shape_cast %61 : vector<8xf32> to vector<8x1xf32>
    %63 = vector.broadcast %62 : vector<8x1xf32> to vector<8x12xf32>
    %64 = arith.subf %35, %63 : vector<8x12xf32>
    %65 = math.exp %64 : vector<8x12xf32>
    %cst_19 = arith.constant dense<0.000000e+00> : vector<8xf32>
    %66 = vector.multi_reduction <add>, %65, %cst_19 [1] : vector<8x12xf32> to vector<8xf32>
    %67 = vector.shape_cast %66 : vector<8xf32> to vector<8x1xf32>
    %68 = math.log %67 : vector<8x1xf32>
    %69 = arith.addf %62, %68 : vector<8x1xf32>
    %70 = arith.mulf %35, %60 : vector<8x12xf32>
    %cst_20 = arith.constant dense<0.000000e+00> : vector<8xf32>
    %71 = vector.multi_reduction <add>, %70, %cst_20 [1] : vector<8x12xf32> to vector<8xf32>
    %72 = vector.shape_cast %71 : vector<8xf32> to vector<8x1xf32>
    %cst_21 = arith.constant dense<0.000000e+00> : vector<8xf32>
    %73 = vector.multi_reduction <add>, %35, %cst_21 [1] : vector<8x12xf32> to vector<8xf32>
    %74 = vector.shape_cast %73 : vector<8xf32> to vector<8x1xf32>
    %cst_22 = arith.constant 0.899999976 : f32
    %75 = vector.broadcast %cst_22 : f32 to vector<8x1xf32>
    %76 = arith.mulf %75, %72 : vector<8x1xf32>
    %77 = arith.subf %69, %76 : vector<8x1xf32>
    %cst_23 = arith.constant 0.00833333377 : f32
    %78 = vector.broadcast %cst_23 : f32 to vector<8x1xf32>
    %79 = arith.mulf %78, %74 : vector<8x1xf32>
    %80 = arith.subf %77, %79 : vector<8x1xf32>
    %81 = tpu.iota {dimensions = array<i32: 1>} : vector<8x8xi32>
    %82 = arith.sitofp %81 : vector<8x8xi32> to vector<8x8xf32>
    %83 = vector.broadcast %43 : vector<8x1xf32> to vector<8x8xf32>
    %84 = arith.cmpf oeq, %82, %83 : vector<8x8xf32>
    %85 = arith.extui %84 : vector<8x8xi1> to vector<8x8xi32>
    %86 = arith.sitofp %85 : vector<8x8xi32> to vector<8x8xf32>
    %cst_24 = arith.constant dense<0xFF800000> : vector<8xf32>
    %87 = vector.multi_reduction <maximumf>, %38, %cst_24 [1] : vector<8x8xf32> to vector<8xf32>
    %88 = vector.shape_cast %87 : vector<8xf32> to vector<8x1xf32>
    %89 = vector.broadcast %88 : vector<8x1xf32> to vector<8x8xf32>
    %90 = arith.subf %38, %89 : vector<8x8xf32>
    %91 = math.exp %90 : vector<8x8xf32>
    %cst_25 = arith.constant dense<0.000000e+00> : vector<8xf32>
    %92 = vector.multi_reduction <add>, %91, %cst_25 [1] : vector<8x8xf32> to vector<8xf32>
    %93 = vector.shape_cast %92 : vector<8xf32> to vector<8x1xf32>
    %94 = math.log %93 : vector<8x1xf32>
    %95 = arith.addf %88, %94 : vector<8x1xf32>
    %96 = arith.mulf %38, %86 : vector<8x8xf32>
    %cst_26 = arith.constant dense<0.000000e+00> : vector<8xf32>
    %97 = vector.multi_reduction <add>, %96, %cst_26 [1] : vector<8x8xf32> to vector<8xf32>
    %98 = vector.shape_cast %97 : vector<8xf32> to vector<8x1xf32>
    %99 = arith.subf %95, %98 : vector<8x1xf32>
    %100 = arith.mulf %36, %60 : vector<8x12xf32>
    %cst_27 = arith.constant dense<0.000000e+00> : vector<8xf32>
    %101 = vector.multi_reduction <add>, %100, %cst_27 [1] : vector<8x12xf32> to vector<8xf32>
    %102 = vector.shape_cast %101 : vector<8xf32> to vector<8x1xf32>
    %cst_28 = arith.constant 0.261799395 : f32
    %103 = vector.broadcast %cst_28 : f32 to vector<8x1xf32>
    %104 = arith.divf %42, %103 : vector<8x1xf32>
    %105 = arith.subf %102, %104 : vector<8x1xf32>
    %cst_29 = arith.constant 5.000000e-01 : f32
    %106 = vector.broadcast %cst_29 : f32 to vector<8x1xf32>
    %107 = arith.cmpf ogt, %105, %106 : vector<8x1xf32>
    %cst_30 = arith.constant 1.000000e+00 : f32
    %108 = vector.broadcast %cst_30 : f32 to vector<8x1xf32>
    %109 = arith.subf %105, %108 : vector<8x1xf32>
    %110 = arith.select %107, %109, %105 : vector<8x1xi1>, vector<8x1xf32>
    %cst_31 = arith.constant -5.000000e-01 : f32
    %111 = vector.broadcast %cst_31 : f32 to vector<8x1xf32>
    %112 = arith.cmpf olt, %110, %111 : vector<8x1xf32>
    %cst_32 = arith.constant 1.000000e+00 : f32
    %113 = vector.broadcast %cst_32 : f32 to vector<8x1xf32>
    %114 = arith.addf %110, %113 : vector<8x1xf32>
    %115 = arith.select %112, %114, %110 : vector<8x1xi1>, vector<8x1xf32>
    %cst_33 = arith.constant 0.000000e+00 : f32
    %116 = vector.broadcast %cst_33 : f32 to vector<8x3xf32>
    %cst_34 = arith.constant 0.000000e+00 : f32
    %117 = vector.broadcast %cst_34 : f32 to vector<8x3xf32>
    %118 = vector.extract_strided_slice %86 {offsets = [0, 0], sizes = [8, 1], strides = [1, 1]} : vector<8x8xf32> to vector<8x1xf32>
    %119 = vector.extract_strided_slice %39 {offsets = [0, 0], sizes = [8, 3], strides = [1, 1]} : vector<8x24xf32> to vector<8x3xf32>
    %120 = vector.broadcast %118 : vector<8x1xf32> to vector<8x3xf32>
    %121 = arith.mulf %120, %119 : vector<8x3xf32>
    %122 = arith.addf %116, %121 : vector<8x3xf32>
    %123 = vector.extract_strided_slice %40 {offsets = [0, 0], sizes = [8, 3], strides = [1, 1]} : vector<8x24xf32> to vector<8x3xf32>
    %124 = vector.broadcast %118 : vector<8x1xf32> to vector<8x3xf32>
    %125 = arith.mulf %124, %123 : vector<8x3xf32>
    %126 = arith.addf %117, %125 : vector<8x3xf32>
    %127 = vector.extract_strided_slice %86 {offsets = [0, 1], sizes = [8, 1], strides = [1, 1]} : vector<8x8xf32> to vector<8x1xf32>
    %128 = vector.extract_strided_slice %39 {offsets = [0, 3], sizes = [8, 3], strides = [1, 1]} : vector<8x24xf32> to vector<8x3xf32>
    %129 = vector.broadcast %127 : vector<8x1xf32> to vector<8x3xf32>
    %130 = arith.mulf %129, %128 : vector<8x3xf32>
    %131 = arith.addf %122, %130 : vector<8x3xf32>
    %132 = vector.extract_strided_slice %40 {offsets = [0, 3], sizes = [8, 3], strides = [1, 1]} : vector<8x24xf32> to vector<8x3xf32>
    %133 = vector.broadcast %127 : vector<8x1xf32> to vector<8x3xf32>
    %134 = arith.mulf %133, %132 : vector<8x3xf32>
    %135 = arith.addf %126, %134 : vector<8x3xf32>
    %136 = vector.extract_strided_slice %86 {offsets = [0, 2], sizes = [8, 1], strides = [1, 1]} : vector<8x8xf32> to vector<8x1xf32>
    %137 = vector.extract_strided_slice %39 {offsets = [0, 6], sizes = [8, 3], strides = [1, 1]} : vector<8x24xf32> to vector<8x3xf32>
    %138 = vector.broadcast %136 : vector<8x1xf32> to vector<8x3xf32>
    %139 = arith.mulf %138, %137 : vector<8x3xf32>
    %140 = arith.addf %131, %139 : vector<8x3xf32>
    %141 = vector.extract_strided_slice %40 {offsets = [0, 6], sizes = [8, 3], strides = [1, 1]} : vector<8x24xf32> to vector<8x3xf32>
    %142 = vector.broadcast %136 : vector<8x1xf32> to vector<8x3xf32>
    %143 = arith.mulf %142, %141 : vector<8x3xf32>
    %144 = arith.addf %135, %143 : vector<8x3xf32>
    %145 = vector.extract_strided_slice %86 {offsets = [0, 3], sizes = [8, 1], strides = [1, 1]} : vector<8x8xf32> to vector<8x1xf32>
    %146 = vector.extract_strided_slice %39 {offsets = [0, 9], sizes = [8, 3], strides = [1, 1]} : vector<8x24xf32> to vector<8x3xf32>
    %147 = vector.broadcast %145 : vector<8x1xf32> to vector<8x3xf32>
    %148 = arith.mulf %147, %146 : vector<8x3xf32>
    %149 = arith.addf %140, %148 : vector<8x3xf32>
    %150 = vector.extract_strided_slice %40 {offsets = [0, 9], sizes = [8, 3], strides = [1, 1]} : vector<8x24xf32> to vector<8x3xf32>
    %151 = vector.broadcast %145 : vector<8x1xf32> to vector<8x3xf32>
    %152 = arith.mulf %151, %150 : vector<8x3xf32>
    %153 = arith.addf %144, %152 : vector<8x3xf32>
    %154 = vector.extract_strided_slice %86 {offsets = [0, 4], sizes = [8, 1], strides = [1, 1]} : vector<8x8xf32> to vector<8x1xf32>
    %155 = vector.extract_strided_slice %39 {offsets = [0, 12], sizes = [8, 3], strides = [1, 1]} : vector<8x24xf32> to vector<8x3xf32>
    %156 = vector.broadcast %154 : vector<8x1xf32> to vector<8x3xf32>
    %157 = arith.mulf %156, %155 : vector<8x3xf32>
    %158 = arith.addf %149, %157 : vector<8x3xf32>
    %159 = vector.extract_strided_slice %40 {offsets = [0, 12], sizes = [8, 3], strides = [1, 1]} : vector<8x24xf32> to vector<8x3xf32>
    %160 = vector.broadcast %154 : vector<8x1xf32> to vector<8x3xf32>
    %161 = arith.mulf %160, %159 : vector<8x3xf32>
    %162 = arith.addf %153, %161 : vector<8x3xf32>
    %163 = vector.extract_strided_slice %86 {offsets = [0, 5], sizes = [8, 1], strides = [1, 1]} : vector<8x8xf32> to vector<8x1xf32>
    %164 = vector.extract_strided_slice %39 {offsets = [0, 15], sizes = [8, 3], strides = [1, 1]} : vector<8x24xf32> to vector<8x3xf32>
    %165 = vector.broadcast %163 : vector<8x1xf32> to vector<8x3xf32>
    %166 = arith.mulf %165, %164 : vector<8x3xf32>
    %167 = arith.addf %158, %166 : vector<8x3xf32>
    %168 = vector.extract_strided_slice %40 {offsets = [0, 15], sizes = [8, 3], strides = [1, 1]} : vector<8x24xf32> to vector<8x3xf32>
    %169 = vector.broadcast %163 : vector<8x1xf32> to vector<8x3xf32>
    %170 = arith.mulf %169, %168 : vector<8x3xf32>
    %171 = arith.addf %162, %170 : vector<8x3xf32>
    %172 = vector.extract_strided_slice %86 {offsets = [0, 6], sizes = [8, 1], strides = [1, 1]} : vector<8x8xf32> to vector<8x1xf32>
    %173 = vector.extract_strided_slice %39 {offsets = [0, 18], sizes = [8, 3], strides = [1, 1]} : vector<8x24xf32> to vector<8x3xf32>
    %174 = vector.broadcast %172 : vector<8x1xf32> to vector<8x3xf32>
    %175 = arith.mulf %174, %173 : vector<8x3xf32>
    %176 = arith.addf %167, %175 : vector<8x3xf32>
    %177 = vector.extract_strided_slice %40 {offsets = [0, 18], sizes = [8, 3], strides = [1, 1]} : vector<8x24xf32> to vector<8x3xf32>
    %178 = vector.broadcast %172 : vector<8x1xf32> to vector<8x3xf32>
    %179 = arith.mulf %178, %177 : vector<8x3xf32>
    %180 = arith.addf %171, %179 : vector<8x3xf32>
    %181 = vector.extract_strided_slice %86 {offsets = [0, 7], sizes = [8, 1], strides = [1, 1]} : vector<8x8xf32> to vector<8x1xf32>
    %182 = vector.extract_strided_slice %39 {offsets = [0, 21], sizes = [8, 3], strides = [1, 1]} : vector<8x24xf32> to vector<8x3xf32>
    %183 = vector.broadcast %181 : vector<8x1xf32> to vector<8x3xf32>
    %184 = arith.mulf %183, %182 : vector<8x3xf32>
    %185 = arith.addf %176, %184 : vector<8x3xf32>
    %186 = vector.extract_strided_slice %40 {offsets = [0, 21], sizes = [8, 3], strides = [1, 1]} : vector<8x24xf32> to vector<8x3xf32>
    %187 = vector.broadcast %181 : vector<8x1xf32> to vector<8x3xf32>
    %188 = arith.mulf %187, %186 : vector<8x3xf32>
    %189 = arith.addf %180, %188 : vector<8x3xf32>
    %190 = arith.subf %185, %44 : vector<8x3xf32>
    %191 = arith.mulf %37, %60 : vector<8x12xf32>
    %cst_35 = arith.constant dense<0.000000e+00> : vector<8xf32>
    %192 = vector.multi_reduction <add>, %191, %cst_35 [1] : vector<8x12xf32> to vector<8xf32>
    %193 = vector.shape_cast %192 : vector<8xf32> to vector<8x1xf32>
    %194 = tpu.iota {dimensions = array<i32: 1>} : vector<1x8xi32>
    %c4_i32 = arith.constant 4 : i32
    %c0_i32_36 = arith.constant 0 : i32
    %195 = arith.cmpi eq, %c4_i32, %c0_i32_36 : i32
    %c1_i32 = arith.constant 1 : i32
    %196 = arith.select %195, %c1_i32, %c4_i32 : i32
    %197 = vector.broadcast %196 : i32 to vector<1x8xi32>
    %198 = arith.remsi %194, %197 : vector<1x8xi32>
    %c0_i32_37 = arith.constant 0 : i32
    %199 = vector.broadcast %c0_i32_37 : i32 to vector<1x8xi32>
    %200 = arith.cmpi ne, %198, %199 : vector<1x8xi32>
    %c0_i32_38 = arith.constant 0 : i32
    %201 = vector.broadcast %c0_i32_38 : i32 to vector<1x8xi32>
    %202 = arith.cmpi slt, %198, %201 : vector<1x8xi32>
    %c0_i32_39 = arith.constant 0 : i32
    %203 = arith.cmpi slt, %196, %c0_i32_39 : i32
    %204 = vector.broadcast %203 : i1 to vector<1x8xi1>
    %205 = vector.broadcast %204 : vector<1x8xi1> to vector<1x8xi1>
    %206 = arith.xori %202, %205 : vector<1x8xi1>
    %207 = arith.andi %206, %200 : vector<1x8xi1>
    %208 = vector.broadcast %196 : i32 to vector<1x8xi32>
    %209 = arith.addi %198, %208 : vector<1x8xi32>
    %210 = arith.select %207, %209, %198 : vector<1x8xi1>, vector<1x8xi32>
    %c2_i32 = arith.constant 2 : i32
    %211 = vector.broadcast %c2_i32 : i32 to vector<1x8xi32>
    %212 = arith.cmpi slt, %210, %211 : vector<1x8xi32>
    %cst_40 = arith.constant 1.000000e+00 : f32
    %cst_41 = arith.constant -1.000000e+00 : f32
    %213 = vector.broadcast %cst_40 : f32 to vector<1x8xf32>
    %214 = vector.broadcast %cst_41 : f32 to vector<1x8xf32>
    %215 = arith.select %212, %213, %214 : vector<1x8xi1>, vector<1x8xf32>
    %c4_i32_42 = arith.constant 4 : i32
    %216 = vector.broadcast %c4_i32_42 : i32 to vector<1x8xi32>
    %217 = arith.cmpi slt, %194, %216 : vector<1x8xi32>
    %cst_43 = arith.constant 1.000000e+00 : f32
    %cst_44 = arith.constant -1.000000e+00 : f32
    %218 = vector.broadcast %cst_43 : f32 to vector<1x8xf32>
    %219 = vector.broadcast %cst_44 : f32 to vector<1x8xf32>
    %220 = arith.select %217, %218, %219 : vector<1x8xi1>, vector<1x8xf32>
    %c1_i32_45 = arith.constant 1 : i32
    %221 = vector.broadcast %c1_i32_45 : i32 to vector<1x8xi32>
    %222 = arith.addi %194, %221 : vector<1x8xi32>
    %c4_i32_46 = arith.constant 4 : i32
    %c0_i32_47 = arith.constant 0 : i32
    %223 = arith.cmpi eq, %c4_i32_46, %c0_i32_47 : i32
    %c1_i32_48 = arith.constant 1 : i32
    %224 = arith.select %223, %c1_i32_48, %c4_i32_46 : i32
    %225 = vector.broadcast %224 : i32 to vector<1x8xi32>
    %226 = arith.remsi %222, %225 : vector<1x8xi32>
    %c0_i32_49 = arith.constant 0 : i32
    %227 = vector.broadcast %c0_i32_49 : i32 to vector<1x8xi32>
    %228 = arith.cmpi ne, %226, %227 : vector<1x8xi32>
    %c0_i32_50 = arith.constant 0 : i32
    %229 = vector.broadcast %c0_i32_50 : i32 to vector<1x8xi32>
    %230 = arith.cmpi slt, %226, %229 : vector<1x8xi32>
    %c0_i32_51 = arith.constant 0 : i32
    %231 = arith.cmpi slt, %224, %c0_i32_51 : i32
    %232 = vector.broadcast %231 : i1 to vector<1x8xi1>
    %233 = vector.broadcast %232 : vector<1x8xi1> to vector<1x8xi1>
    %234 = arith.xori %230, %233 : vector<1x8xi1>
    %235 = arith.andi %234, %228 : vector<1x8xi1>
    %236 = vector.broadcast %224 : i32 to vector<1x8xi32>
    %237 = arith.addi %226, %236 : vector<1x8xi32>
    %238 = arith.select %235, %237, %226 : vector<1x8xi1>, vector<1x8xi32>
    %c2_i32_52 = arith.constant 2 : i32
    %239 = vector.broadcast %c2_i32_52 : i32 to vector<1x8xi32>
    %240 = arith.cmpi slt, %238, %239 : vector<1x8xi32>
    %cst_53 = arith.constant 1.000000e+00 : f32
    %cst_54 = arith.constant -1.000000e+00 : f32
    %241 = vector.broadcast %cst_53 : f32 to vector<1x8xf32>
    %242 = vector.broadcast %cst_54 : f32 to vector<1x8xf32>
    %243 = arith.select %240, %241, %242 : vector<1x8xi1>, vector<1x8xf32>
    %244 = vector.extract_strided_slice %189 {offsets = [0, 0], sizes = [8, 1], strides = [1, 1]} : vector<8x3xf32> to vector<8x1xf32>
    %245 = vector.extract_strided_slice %189 {offsets = [0, 1], sizes = [8, 1], strides = [1, 1]} : vector<8x3xf32> to vector<8x1xf32>
    %246 = vector.extract_strided_slice %189 {offsets = [0, 2], sizes = [8, 1], strides = [1, 1]} : vector<8x3xf32> to vector<8x1xf32>
    %cst_55 = arith.constant 5.000000e-01 : f32
    %247 = vector.broadcast %cst_55 : f32 to vector<8x1xf32>
    %248 = arith.mulf %247, %244 : vector<8x1xf32>
    %249 = vector.broadcast %248 : vector<8x1xf32> to vector<8x8xf32>
    %250 = vector.broadcast %215 : vector<1x8xf32> to vector<8x8xf32>
    %251 = arith.mulf %249, %250 : vector<8x8xf32>
    %cst_56 = arith.constant 5.000000e-01 : f32
    %252 = vector.broadcast %cst_56 : f32 to vector<8x1xf32>
    %253 = arith.mulf %252, %246 : vector<8x1xf32>
    %254 = vector.broadcast %253 : vector<8x1xf32> to vector<8x8xf32>
    %255 = vector.broadcast %220 : vector<1x8xf32> to vector<8x8xf32>
    %256 = arith.mulf %254, %255 : vector<8x8xf32>
    %cst_57 = arith.constant 5.000000e-01 : f32
    %257 = vector.broadcast %cst_57 : f32 to vector<8x1xf32>
    %258 = arith.mulf %257, %245 : vector<8x1xf32>
    %259 = vector.broadcast %258 : vector<8x1xf32> to vector<8x8xf32>
    %260 = vector.broadcast %243 : vector<1x8xf32> to vector<8x8xf32>
    %261 = arith.mulf %259, %260 : vector<8x8xf32>
    %262 = math.cos %193 : vector<8x1xf32>
    %263 = math.sin %193 : vector<8x1xf32>
    %264 = vector.broadcast %262 : vector<8x1xf32> to vector<8x8xf32>
    %265 = arith.mulf %264, %251 : vector<8x8xf32>
    %266 = vector.broadcast %263 : vector<8x1xf32> to vector<8x8xf32>
    %267 = arith.mulf %266, %261 : vector<8x8xf32>
    %268 = arith.addf %265, %267 : vector<8x8xf32>
    %269 = vector.extract_strided_slice %32 {offsets = [0, 0], sizes = [8, 1], strides = [1, 1]} : vector<8x3xf32> to vector<8x1xf32>
    %270 = vector.broadcast %269 : vector<8x1xf32> to vector<8x8xf32>
    %271 = arith.addf %268, %270 : vector<8x8xf32>
    %272 = vector.extract_strided_slice %32 {offsets = [0, 1], sizes = [8, 1], strides = [1, 1]} : vector<8x3xf32> to vector<8x1xf32>
    %273 = vector.broadcast %272 : vector<8x1xf32> to vector<8x8xf32>
    %274 = arith.addf %256, %273 : vector<8x8xf32>
    %cst_58 = arith.constant 0.000000e+00 : f32
    %275 = vector.broadcast %cst_58 : f32 to vector<8x1xf32>
    %276 = arith.subf %275, %263 : vector<8x1xf32>
    %277 = vector.broadcast %276 : vector<8x1xf32> to vector<8x8xf32>
    %278 = arith.mulf %277, %251 : vector<8x8xf32>
    %279 = vector.broadcast %262 : vector<8x1xf32> to vector<8x8xf32>
    %280 = arith.mulf %279, %261 : vector<8x8xf32>
    %281 = arith.addf %278, %280 : vector<8x8xf32>
    %282 = vector.extract_strided_slice %32 {offsets = [0, 2], sizes = [8, 1], strides = [1, 1]} : vector<8x3xf32> to vector<8x1xf32>
    %283 = vector.broadcast %282 : vector<8x1xf32> to vector<8x8xf32>
    %284 = arith.addf %281, %283 : vector<8x8xf32>
    %285 = vector.extract_strided_slice %44 {offsets = [0, 0], sizes = [8, 1], strides = [1, 1]} : vector<8x3xf32> to vector<8x1xf32>
    %286 = vector.extract_strided_slice %44 {offsets = [0, 1], sizes = [8, 1], strides = [1, 1]} : vector<8x3xf32> to vector<8x1xf32>
    %287 = vector.extract_strided_slice %44 {offsets = [0, 2], sizes = [8, 1], strides = [1, 1]} : vector<8x3xf32> to vector<8x1xf32>
    %cst_59 = arith.constant 5.000000e-01 : f32
    %288 = vector.broadcast %cst_59 : f32 to vector<8x1xf32>
    %289 = arith.mulf %288, %285 : vector<8x1xf32>
    %290 = vector.broadcast %289 : vector<8x1xf32> to vector<8x8xf32>
    %291 = vector.broadcast %215 : vector<1x8xf32> to vector<8x8xf32>
    %292 = arith.mulf %290, %291 : vector<8x8xf32>
    %cst_60 = arith.constant 5.000000e-01 : f32
    %293 = vector.broadcast %cst_60 : f32 to vector<8x1xf32>
    %294 = arith.mulf %293, %287 : vector<8x1xf32>
    %295 = vector.broadcast %294 : vector<8x1xf32> to vector<8x8xf32>
    %296 = vector.broadcast %220 : vector<1x8xf32> to vector<8x8xf32>
    %297 = arith.mulf %295, %296 : vector<8x8xf32>
    %cst_61 = arith.constant 5.000000e-01 : f32
    %298 = vector.broadcast %cst_61 : f32 to vector<8x1xf32>
    %299 = arith.mulf %298, %286 : vector<8x1xf32>
    %300 = vector.broadcast %299 : vector<8x1xf32> to vector<8x8xf32>
    %301 = vector.broadcast %243 : vector<1x8xf32> to vector<8x8xf32>
    %302 = arith.mulf %300, %301 : vector<8x8xf32>
    %303 = math.cos %42 : vector<8x1xf32>
    %304 = math.sin %42 : vector<8x1xf32>
    %305 = vector.broadcast %303 : vector<8x1xf32> to vector<8x8xf32>
    %306 = arith.mulf %305, %292 : vector<8x8xf32>
    %307 = vector.broadcast %304 : vector<8x1xf32> to vector<8x8xf32>
    %308 = arith.mulf %307, %302 : vector<8x8xf32>
    %309 = arith.addf %306, %308 : vector<8x8xf32>
    %310 = vector.extract_strided_slice %34 {offsets = [0, 0], sizes = [8, 1], strides = [1, 1]} : vector<8x3xf32> to vector<8x1xf32>
    %311 = vector.broadcast %310 : vector<8x1xf32> to vector<8x8xf32>
    %312 = arith.addf %309, %311 : vector<8x8xf32>
    %313 = vector.extract_strided_slice %34 {offsets = [0, 1], sizes = [8, 1], strides = [1, 1]} : vector<8x3xf32> to vector<8x1xf32>
    %314 = vector.broadcast %313 : vector<8x1xf32> to vector<8x8xf32>
    %315 = arith.addf %297, %314 : vector<8x8xf32>
    %cst_62 = arith.constant 0.000000e+00 : f32
    %316 = vector.broadcast %cst_62 : f32 to vector<8x1xf32>
    %317 = arith.subf %316, %304 : vector<8x1xf32>
    %318 = vector.broadcast %317 : vector<8x1xf32> to vector<8x8xf32>
    %319 = arith.mulf %318, %292 : vector<8x8xf32>
    %320 = vector.broadcast %303 : vector<8x1xf32> to vector<8x8xf32>
    %321 = arith.mulf %320, %302 : vector<8x8xf32>
    %322 = arith.addf %319, %321 : vector<8x8xf32>
    %323 = vector.extract_strided_slice %34 {offsets = [0, 2], sizes = [8, 1], strides = [1, 1]} : vector<8x3xf32> to vector<8x1xf32>
    %324 = vector.broadcast %323 : vector<8x1xf32> to vector<8x8xf32>
    %325 = arith.addf %322, %324 : vector<8x8xf32>
    %326 = arith.subf %271, %312 : vector<8x8xf32>
    %327 = math.absf %326 : vector<8x8xf32>
    %cst_63 = arith.constant 1.000000e+00 : f32
    %328 = vector.broadcast %cst_63 : f32 to vector<8x8xf32>
    %329 = arith.minimumf %327, %328 : vector<8x8xf32>
    %cst_64 = arith.constant 5.000000e-01 : f32
    %330 = vector.broadcast %cst_64 : f32 to vector<8x8xf32>
    %331 = arith.mulf %330, %329 : vector<8x8xf32>
    %332 = arith.mulf %331, %329 : vector<8x8xf32>
    %333 = arith.subf %327, %329 : vector<8x8xf32>
    %334 = arith.addf %332, %333 : vector<8x8xf32>
    %335 = arith.subf %274, %315 : vector<8x8xf32>
    %336 = math.absf %335 : vector<8x8xf32>
    %cst_65 = arith.constant 1.000000e+00 : f32
    %337 = vector.broadcast %cst_65 : f32 to vector<8x8xf32>
    %338 = arith.minimumf %336, %337 : vector<8x8xf32>
    %cst_66 = arith.constant 5.000000e-01 : f32
    %339 = vector.broadcast %cst_66 : f32 to vector<8x8xf32>
    %340 = arith.mulf %339, %338 : vector<8x8xf32>
    %341 = arith.mulf %340, %338 : vector<8x8xf32>
    %342 = arith.subf %336, %338 : vector<8x8xf32>
    %343 = arith.addf %341, %342 : vector<8x8xf32>
    %344 = arith.addf %334, %343 : vector<8x8xf32>
    %345 = arith.subf %284, %325 : vector<8x8xf32>
    %346 = math.absf %345 : vector<8x8xf32>
    %cst_67 = arith.constant 1.000000e+00 : f32
    %347 = vector.broadcast %cst_67 : f32 to vector<8x8xf32>
    %348 = arith.minimumf %346, %347 : vector<8x8xf32>
    %cst_68 = arith.constant 5.000000e-01 : f32
    %349 = vector.broadcast %cst_68 : f32 to vector<8x8xf32>
    %350 = arith.mulf %349, %348 : vector<8x8xf32>
    %351 = arith.mulf %350, %348 : vector<8x8xf32>
    %352 = arith.subf %346, %348 : vector<8x8xf32>
    %353 = arith.addf %351, %352 : vector<8x8xf32>
    %354 = arith.addf %344, %353 : vector<8x8xf32>
    %c0_69 = arith.constant 0 : index
    %c0_70 = arith.constant 0 : index
    %355 = vector.load %arg6[%c0_69, %c0_70] : memref<8x128xf32, #tpu.memory_space<vmem>>, vector<8x1xf32>
    %356 = arith.extui %6 : vector<8x1xi1> to vector<8x1xi32>
    %357 = arith.sitofp %356 : vector<8x1xi32> to vector<8x1xf32>
    %358 = arith.addf %355, %357 : vector<8x1xf32>
    %c0_71 = arith.constant 0 : index
    %c0_72 = arith.constant 0 : index
    %359 = vector.load %arg6[%c0_71, %c0_72] : memref<8x128xf32, #tpu.memory_space<vmem>>, vector<8x1xf32>
    tpu.vector_store %arg6[%c0_71, %c0_72], %358 {strides = array<i32>} : memref<8x128xf32, #tpu.memory_space<vmem>>, vector<8x1xf32>,
    %c0_73 = arith.constant 0 : index
    %c1 = arith.constant 1 : index
    %360 = vector.load %arg6[%c0_73, %c1] : memref<8x128xf32, #tpu.memory_space<vmem>>, vector<8x1xf32>
    %cst_74 = arith.constant 0.000000e+00 : f32
    %361 = vector.broadcast %cst_74 : f32 to vector<8x1xf32>
    %362 = arith.select %6, %49, %361 : vector<8x1xi1>, vector<8x1xf32>
    %363 = arith.addf %360, %362 : vector<8x1xf32>
    %c0_75 = arith.constant 0 : index
    %c1_76 = arith.constant 1 : index
    %364 = vector.load %arg6[%c0_75, %c1_76] : memref<8x128xf32, #tpu.memory_space<vmem>>, vector<8x1xf32>
    tpu.vector_store %arg6[%c0_75, %c1_76], %363 {strides = array<i32>} : memref<8x128xf32, #tpu.memory_space<vmem>>, vector<8x1xf32>,
    %c0_77 = arith.constant 0 : index
    %c2 = arith.constant 2 : index
    %365 = vector.load %arg6[%c0_77, %c2] : memref<8x128xf32, #tpu.memory_space<vmem>>, vector<8x1xf32>
    %cst_78 = arith.constant 0.000000e+00 : f32
    %366 = vector.broadcast %cst_78 : f32 to vector<8x1xf32>
    %367 = arith.select %6, %54, %366 : vector<8x1xi1>, vector<8x1xf32>
    %368 = arith.addf %365, %367 : vector<8x1xf32>
    %c0_79 = arith.constant 0 : index
    %c2_80 = arith.constant 2 : index
    %369 = vector.load %arg6[%c0_79, %c2_80] : memref<8x128xf32, #tpu.memory_space<vmem>>, vector<8x1xf32>
    tpu.vector_store %arg6[%c0_79, %c2_80], %368 {strides = array<i32>} : memref<8x128xf32, #tpu.memory_space<vmem>>, vector<8x1xf32>,
    %c0_81 = arith.constant 0 : index
    %c3 = arith.constant 3 : index
    %370 = vector.load %arg6[%c0_81, %c3] : memref<8x128xf32, #tpu.memory_space<vmem>>, vector<8x1xf32>
    %cst_82 = arith.constant 0.000000e+00 : f32
    %371 = vector.broadcast %cst_82 : f32 to vector<8x1xf32>
    %372 = arith.select %6, %80, %371 : vector<8x1xi1>, vector<8x1xf32>
    %373 = arith.addf %370, %372 : vector<8x1xf32>
    %c0_83 = arith.constant 0 : index
    %c3_84 = arith.constant 3 : index
    %374 = vector.load %arg6[%c0_83, %c3_84] : memref<8x128xf32, #tpu.memory_space<vmem>>, vector<8x1xf32>
    tpu.vector_store %arg6[%c0_83, %c3_84], %373 {strides = array<i32>} : memref<8x128xf32, #tpu.memory_space<vmem>>, vector<8x1xf32>,
    %c0_85 = arith.constant 0 : index
    %c4 = arith.constant 4 : index
    %375 = vector.load %arg6[%c0_85, %c4] : memref<8x128xf32, #tpu.memory_space<vmem>>, vector<8x1xf32>
    %cst_86 = arith.constant 0.000000e+00 : f32
    %376 = vector.broadcast %cst_86 : f32 to vector<8x1xf32>
    %377 = arith.select %6, %99, %376 : vector<8x1xi1>, vector<8x1xf32>
    %378 = arith.addf %375, %377 : vector<8x1xf32>
    %c0_87 = arith.constant 0 : index
    %c4_88 = arith.constant 4 : index
    %379 = vector.load %arg6[%c0_87, %c4_88] : memref<8x128xf32, #tpu.memory_space<vmem>>, vector<8x1xf32>
    tpu.vector_store %arg6[%c0_87, %c4_88], %378 {strides = array<i32>} : memref<8x128xf32, #tpu.memory_space<vmem>>, vector<8x1xf32>,
    %c0_89 = arith.constant 0 : index
    %c5 = arith.constant 5 : index
    %380 = vector.load %arg6[%c0_89, %c5] : memref<8x128xf32, #tpu.memory_space<vmem>>, vector<8x1xf32>
    %381 = math.absf %115 : vector<8x1xf32>
    %cst_90 = arith.constant 1.000000e+00 : f32
    %382 = vector.broadcast %cst_90 : f32 to vector<8x1xf32>
    %383 = arith.minimumf %381, %382 : vector<8x1xf32>
    %cst_91 = arith.constant 5.000000e-01 : f32
    %384 = vector.broadcast %cst_91 : f32 to vector<8x1xf32>
    %385 = arith.mulf %384, %383 : vector<8x1xf32>
    %386 = arith.mulf %385, %383 : vector<8x1xf32>
    %387 = arith.subf %381, %383 : vector<8x1xf32>
    %388 = arith.addf %386, %387 : vector<8x1xf32>
    %cst_92 = arith.constant 0.000000e+00 : f32
    %389 = vector.broadcast %cst_92 : f32 to vector<8x1xf32>
    %390 = arith.select %6, %388, %389 : vector<8x1xi1>, vector<8x1xf32>
    %391 = arith.addf %380, %390 : vector<8x1xf32>
    %c0_93 = arith.constant 0 : index
    %c5_94 = arith.constant 5 : index
    %392 = vector.load %arg6[%c0_93, %c5_94] : memref<8x128xf32, #tpu.memory_space<vmem>>, vector<8x1xf32>
    tpu.vector_store %arg6[%c0_93, %c5_94], %391 {strides = array<i32>} : memref<8x128xf32, #tpu.memory_space<vmem>>, vector<8x1xf32>,
    %c0_95 = arith.constant 0 : index
    %c8 = arith.constant 8 : index
    %393 = vector.load %arg6[%c0_95, %c8] : memref<8x128xf32, #tpu.memory_space<vmem>>, vector<8x3xf32>
    %394 = math.absf %190 : vector<8x3xf32>
    %cst_96 = arith.constant 1.000000e+00 : f32
    %395 = vector.broadcast %cst_96 : f32 to vector<8x3xf32>
    %396 = arith.minimumf %394, %395 : vector<8x3xf32>
    %cst_97 = arith.constant 5.000000e-01 : f32
    %397 = vector.broadcast %cst_97 : f32 to vector<8x3xf32>
    %398 = arith.mulf %397, %396 : vector<8x3xf32>
    %399 = arith.mulf %398, %396 : vector<8x3xf32>
    %400 = arith.subf %394, %396 : vector<8x3xf32>
    %401 = arith.addf %399, %400 : vector<8x3xf32>
    %cst_98 = arith.constant 0.000000e+00 : f32
    %402 = vector.shape_cast %6 : vector<8x1xi1> to vector<8x1xi1>
    %403 = vector.broadcast %402 : vector<8x1xi1> to vector<8x3xi1>
    %404 = vector.broadcast %cst_98 : f32 to vector<8x3xf32>
    %405 = arith.select %403, %401, %404 : vector<8x3xi1>, vector<8x3xf32>
    %406 = arith.addf %393, %405 : vector<8x3xf32>
    %c0_99 = arith.constant 0 : index
    %c8_100 = arith.constant 8 : index
    %407 = vector.load %arg6[%c0_99, %c8_100] : memref<8x128xf32, #tpu.memory_space<vmem>>, vector<8x3xf32>
    tpu.vector_store %arg6[%c0_99, %c8_100], %406 {strides = array<i32>} : memref<8x128xf32, #tpu.memory_space<vmem>>, vector<8x3xf32>,
    %c0_101 = arith.constant 0 : index
    %c16 = arith.constant 16 : index
    %408 = vector.load %arg6[%c0_101, %c16] : memref<8x128xf32, #tpu.memory_space<vmem>>, vector<8x8xf32>
    %cst_102 = arith.constant 0.000000e+00 : f32
    %409 = vector.shape_cast %6 : vector<8x1xi1> to vector<8x1xi1>
    %410 = vector.broadcast %409 : vector<8x1xi1> to vector<8x8xi1>
    %411 = vector.broadcast %cst_102 : f32 to vector<8x8xf32>
    %412 = arith.select %410, %354, %411 : vector<8x8xi1>, vector<8x8xf32>
    %413 = arith.addf %408, %412 : vector<8x8xf32>
    %c0_103 = arith.constant 0 : index
    %c16_104 = arith.constant 16 : index
    %414 = vector.load %arg6[%c0_103, %c16_104] : memref<8x128xf32, #tpu.memory_space<vmem>>, vector<8x8xf32>
    tpu.vector_store %arg6[%c0_103, %c16_104], %413 {strides = array<i32>} : memref<8x128xf32, #tpu.memory_space<vmem>>, vector<8x8xf32>,
    %c0_i32_105 = arith.constant 0 : i32
    %415 = arith.cmpi eq, %arg0, %c0_i32_105 : i32
    %416 = arith.extui %415 : i1 to i32
    %c0_i32_106 = arith.constant 0 : i32
    %417 = arith.cmpi ne, %416, %c0_i32_106 : i32
    scf.if %417 {
      %c0_107 = arith.constant 0 : index
      %c0_108 = arith.constant 0 : index
      %418 = vector.load %arg6[%c0_107, %c0_108] : memref<8x128xf32, #tpu.memory_space<vmem>>, vector<8x128xf32>
      %419 = vector.extract_strided_slice %418 {offsets = [0, 0], sizes = [8, 1], strides = [1, 1]} : vector<8x128xf32> to vector<8x1xf32>
      %420 = vector.shape_cast %419 : vector<8x1xf32> to vector<1x8x1xf32>
      %cst_109 = arith.constant dense<0.000000e+00> : vector<1xf32>
      %421 = vector.multi_reduction <add>, %420, %cst_109 [1, 2] : vector<1x8x1xf32> to vector<1xf32>
      %422 = vector.shape_cast %421 : vector<1xf32> to vector<1x1x1xf32>
      %423 = vector.extract %422[0, 0, 0] : f32 from vector<1x1x1xf32>
      %cst_110 = arith.constant 1.000000e+00 : f32
      %424 = arith.maximumf %423, %cst_110 : f32
      %cst_111 = arith.constant 1.000000e+00 : f32
      %425 = arith.divf %cst_111, %424 : f32
      %c0_112 = arith.constant 0 : index
      %c0_113 = arith.constant 0 : index
      %426 = vector.load %arg5[%c0_112, %c0_113] : memref<8x64xf32, #tpu.memory_space<vmem>>, vector<8x64xf32>
      %427 = vector.shape_cast %426 : vector<8x64xf32> to vector<1x8x64xf32>
      %cst_114 = arith.constant dense<0.000000e+00> : vector<1xf32>
      %428 = vector.multi_reduction <add>, %427, %cst_114 [1, 2] : vector<1x8x64xf32> to vector<1xf32>
      %429 = vector.shape_cast %428 : vector<1xf32> to vector<1x1x1xf32>
      %430 = vector.extract %429[0, 0, 0] : f32 from vector<1x1x1xf32>
      %cst_115 = arith.constant 6.400000e+01 : f32
      %431 = arith.divf %425, %cst_115 : f32
      %432 = arith.mulf %430, %431 : f32
      %433 = vector.extract_strided_slice %418 {offsets = [0, 1], sizes = [8, 1], strides = [1, 1]} : vector<8x128xf32> to vector<8x1xf32>
      %434 = vector.shape_cast %433 : vector<8x1xf32> to vector<1x8x1xf32>
      %cst_116 = arith.constant dense<0.000000e+00> : vector<1xf32>
      %435 = vector.multi_reduction <add>, %434, %cst_116 [1, 2] : vector<1x8x1xf32> to vector<1xf32>
      %436 = vector.shape_cast %435 : vector<1xf32> to vector<1x1x1xf32>
      %437 = vector.extract %436[0, 0, 0] : f32 from vector<1x1x1xf32>
      %438 = arith.mulf %437, %425 : f32
      %439 = vector.extract_strided_slice %418 {offsets = [0, 2], sizes = [8, 1], strides = [1, 1]} : vector<8x128xf32> to vector<8x1xf32>
      %440 = vector.shape_cast %439 : vector<8x1xf32> to vector<1x8x1xf32>
      %cst_117 = arith.constant dense<0.000000e+00> : vector<1xf32>
      %441 = vector.multi_reduction <add>, %440, %cst_117 [1, 2] : vector<1x8x1xf32> to vector<1xf32>
      %442 = vector.shape_cast %441 : vector<1xf32> to vector<1x1x1xf32>
      %443 = vector.extract %442[0, 0, 0] : f32 from vector<1x1x1xf32>
      %444 = arith.mulf %443, %425 : f32
      %445 = vector.extract_strided_slice %418 {offsets = [0, 3], sizes = [8, 1], strides = [1, 1]} : vector<8x128xf32> to vector<8x1xf32>
      %446 = vector.shape_cast %445 : vector<8x1xf32> to vector<1x8x1xf32>
      %cst_118 = arith.constant dense<0.000000e+00> : vector<1xf32>
      %447 = vector.multi_reduction <add>, %446, %cst_118 [1, 2] : vector<1x8x1xf32> to vector<1xf32>
      %448 = vector.shape_cast %447 : vector<1xf32> to vector<1x1x1xf32>
      %449 = vector.extract %448[0, 0, 0] : f32 from vector<1x1x1xf32>
      %450 = arith.mulf %449, %425 : f32
      %451 = vector.extract_strided_slice %418 {offsets = [0, 4], sizes = [8, 1], strides = [1, 1]} : vector<8x128xf32> to vector<8x1xf32>
      %452 = vector.shape_cast %451 : vector<8x1xf32> to vector<1x8x1xf32>
      %cst_119 = arith.constant dense<0.000000e+00> : vector<1xf32>
      %453 = vector.multi_reduction <add>, %452, %cst_119 [1, 2] : vector<1x8x1xf32> to vector<1xf32>
      %454 = vector.shape_cast %453 : vector<1xf32> to vector<1x1x1xf32>
      %455 = vector.extract %454[0, 0, 0] : f32 from vector<1x1x1xf32>
      %456 = arith.mulf %455, %425 : f32
      %457 = vector.extract_strided_slice %418 {offsets = [0, 5], sizes = [8, 1], strides = [1, 1]} : vector<8x128xf32> to vector<8x1xf32>
      %458 = vector.shape_cast %457 : vector<8x1xf32> to vector<1x8x1xf32>
      %cst_120 = arith.constant dense<0.000000e+00> : vector<1xf32>
      %459 = vector.multi_reduction <add>, %458, %cst_120 [1, 2] : vector<1x8x1xf32> to vector<1xf32>
      %460 = vector.shape_cast %459 : vector<1xf32> to vector<1x1x1xf32>
      %461 = vector.extract %460[0, 0, 0] : f32 from vector<1x1x1xf32>
      %462 = arith.mulf %461, %425 : f32
      %463 = vector.extract_strided_slice %418 {offsets = [0, 8], sizes = [8, 3], strides = [1, 1]} : vector<8x128xf32> to vector<8x3xf32>
      %464 = vector.shape_cast %463 : vector<8x3xf32> to vector<1x8x3xf32>
      %cst_121 = arith.constant dense<0.000000e+00> : vector<1xf32>
      %465 = vector.multi_reduction <add>, %464, %cst_121 [1, 2] : vector<1x8x3xf32> to vector<1xf32>
      %466 = vector.shape_cast %465 : vector<1xf32> to vector<1x1x1xf32>
      %467 = vector.extract %466[0, 0, 0] : f32 from vector<1x1x1xf32>
      %cst_122 = arith.constant 3.000000e+00 : f32
      %468 = arith.divf %425, %cst_122 : f32
      %469 = arith.mulf %467, %468 : f32
      %470 = vector.extract_strided_slice %418 {offsets = [0, 16], sizes = [8, 8], strides = [1, 1]} : vector<8x128xf32> to vector<8x8xf32>
      %471 = vector.shape_cast %470 : vector<8x8xf32> to vector<1x8x8xf32>
      %cst_123 = arith.constant dense<0.000000e+00> : vector<1xf32>
      %472 = vector.multi_reduction <add>, %471, %cst_123 [1, 2] : vector<1x8x8xf32> to vector<1xf32>
      %473 = vector.shape_cast %472 : vector<1xf32> to vector<1x1x1xf32>
      %474 = vector.extract %473[0, 0, 0] : f32 from vector<1x1x1xf32>
      %cst_124 = arith.constant 2.400000e+01 : f32
      %475 = arith.divf %425, %cst_124 : f32
      %476 = arith.mulf %474, %475 : f32
      %cst_125 = arith.constant 5.000000e-01 : f32
      %477 = arith.mulf %cst_125, %438 : f32
      %478 = arith.addf %432, %477 : f32
      %479 = arith.addf %478, %444 : f32
      %480 = arith.addf %479, %450 : f32
      %481 = arith.addf %480, %456 : f32
      %cst_126 = arith.constant 1.000000e+01 : f32
      %482 = arith.mulf %cst_126, %462 : f32
      %483 = arith.addf %481, %482 : f32
      %cst_127 = arith.constant 2.000000e+01 : f32
      %484 = arith.mulf %cst_127, %469 : f32
      %485 = arith.addf %483, %484 : f32
      %486 = arith.addf %485, %476 : f32
      %c0_128 = arith.constant 0 : index
      %487 = memref.load %arg4[%c0_128] : memref<16xf32, #tpu.memory_space<smem>>
      memref.store %486, %arg4[%c0_128] : memref<16xf32, #tpu.memory_space<smem>>
      %c1_129 = arith.constant 1 : index
      %488 = memref.load %arg4[%c1_129] : memref<16xf32, #tpu.memory_space<smem>>
      memref.store %432, %arg4[%c1_129] : memref<16xf32, #tpu.memory_space<smem>>
      %c2_130 = arith.constant 2 : index
      %489 = memref.load %arg4[%c2_130] : memref<16xf32, #tpu.memory_space<smem>>
      memref.store %438, %arg4[%c2_130] : memref<16xf32, #tpu.memory_space<smem>>
      %c3_131 = arith.constant 3 : index
      %490 = memref.load %arg4[%c3_131] : memref<16xf32, #tpu.memory_space<smem>>
      memref.store %450, %arg4[%c3_131] : memref<16xf32, #tpu.memory_space<smem>>
      %c4_132 = arith.constant 4 : index
      %491 = memref.load %arg4[%c4_132] : memref<16xf32, #tpu.memory_space<smem>>
      memref.store %456, %arg4[%c4_132] : memref<16xf32, #tpu.memory_space<smem>>
      %c5_133 = arith.constant 5 : index
      %492 = memref.load %arg4[%c5_133] : memref<16xf32, #tpu.memory_space<smem>>
      memref.store %462, %arg4[%c5_133] : memref<16xf32, #tpu.memory_space<smem>>
      %c6 = arith.constant 6 : index
      %493 = memref.load %arg4[%c6] : memref<16xf32, #tpu.memory_space<smem>>
      memref.store %469, %arg4[%c6] : memref<16xf32, #tpu.memory_space<smem>>
      %c7 = arith.constant 7 : index
      %494 = memref.load %arg4[%c7] : memref<16xf32, #tpu.memory_space<smem>>
      memref.store %444, %arg4[%c7] : memref<16xf32, #tpu.memory_space<smem>>
      %c8_134 = arith.constant 8 : index
      %495 = memref.load %arg4[%c8_134] : memref<16xf32, #tpu.memory_space<smem>>
      memref.store %476, %arg4[%c8_134] : memref<16xf32, #tpu.memory_space<smem>>
      %cst_135 = arith.constant 0.000000e+00 : f32
      %c9 = arith.constant 9 : index
      %496 = memref.load %arg4[%c9] : memref<16xf32, #tpu.memory_space<smem>>
      memref.store %cst_135, %arg4[%c9] : memref<16xf32, #tpu.memory_space<smem>>
      %cst_136 = arith.constant 0.000000e+00 : f32
      %c10 = arith.constant 10 : index
      %497 = memref.load %arg4[%c10] : memref<16xf32, #tpu.memory_space<smem>>
      memref.store %cst_136, %arg4[%c10] : memref<16xf32, #tpu.memory_space<smem>>
      %cst_137 = arith.constant 0.000000e+00 : f32
      %c11 = arith.constant 11 : index
      %498 = memref.load %arg4[%c11] : memref<16xf32, #tpu.memory_space<smem>>
      memref.store %cst_137, %arg4[%c11] : memref<16xf32, #tpu.memory_space<smem>>
      %cst_138 = arith.constant 0.000000e+00 : f32
      %c12 = arith.constant 12 : index
      %499 = memref.load %arg4[%c12] : memref<16xf32, #tpu.memory_space<smem>>
      memref.store %cst_138, %arg4[%c12] : memref<16xf32, #tpu.memory_space<smem>>
      %cst_139 = arith.constant 0.000000e+00 : f32
      %c13 = arith.constant 13 : index
      %500 = memref.load %arg4[%c13] : memref<16xf32, #tpu.memory_space<smem>>
      memref.store %cst_139, %arg4[%c13] : memref<16xf32, #tpu.memory_space<smem>>
      %cst_140 = arith.constant 0.000000e+00 : f32
      %c14 = arith.constant 14 : index
      %501 = memref.load %arg4[%c14] : memref<16xf32, #tpu.memory_space<smem>>
      memref.store %cst_140, %arg4[%c14] : memref<16xf32, #tpu.memory_space<smem>>
      %cst_141 = arith.constant 0.000000e+00 : f32
      %c15 = arith.constant 15 : index
      %502 = memref.load %arg4[%c15] : memref<16xf32, #tpu.memory_space<smem>>
      memref.store %cst_141, %arg4[%c15] : memref<16xf32, #tpu.memory_space<smem>>
    } else {
    }
    return
  }
  func.func @transform_0(%arg0: i32) -> (i32, i32) {
    %c0_i32 = arith.constant 0 : i32
    %c0_i32_0 = arith.constant 0 : i32
    return %arg0, %c0_i32 : i32, i32
  }
  func.func @transform_1(%arg0: i32) -> (i32, i32) {
    %c0_i32 = arith.constant 0 : i32
    %c0_i32_0 = arith.constant 0 : i32
    return %arg0, %c0_i32 : i32, i32
  }
  func.func @transform_2(%arg0: i32) -> (i32, i32) {
    %c0_i32 = arith.constant 0 : i32
    %c0_i32_0 = arith.constant 0 : i32
    return %arg0, %c0_i32 : i32, i32
  }
  func.func @transform_3(%arg0: i32) -> i32 {
    %c0_i32 = arith.constant 0 : i32
    %c0_i32_0 = arith.constant 0 : i32
    return %c0_i32 : i32
  }
}

</mosaic_0001>

<llo_original>
// kernel: tpu_custom_call.1
$region0: #{tpu_custom_call.1}
  #allocation0 [shape = 'u32[]', space=smem, size = 0x4, offset = 0x4, fixed_abs, tag = 'smem constant byte address 0x4 - core index']
  #allocation1 [shape = 'u32[72,128]{1,0:T(1,128)}', space=vmem, size = 0x9000, scoped, tag = 'internal scratch']
  #allocation2 [shape = 'f32[8,64]{1,0:T(8,128)}', space=vmem, size = 0x1000, scoped, tag = 'scratch operand']
  #allocation3 [shape = 'f32[8,128]{1,0:T(8,128)}', space=vmem, size = 0x1000, scoped, tag = 'scratch operand']
  %s0 = inlined_call_operand.hbm [shape: f32[8,64], index: 0, kind: input, shape index: {}]
  %s1 = inlined_call_operand.hbm [shape: s8[8,64], index: 1, kind: input, shape index: {}]
  %s2 = inlined_call_operand.hbm [shape: f32[8,128], index: 2, kind: input, shape index: {}]
  %s3 = inlined_call_operand.hbm [shape: f32[16], index: 3, kind: output, shape index: {}]
  %s4 = sld [smem:[#allocation0]]
  $region42: #{tpu_custom_call.1} parent=0
    _
  %s6 = ssub.s32 1, %s4
  %s7 = scalar_select 0, %s6, %s4
  $region1: #{tpu_custom_call.1} parent=0
    #allocation4 [shape = 'u8[4096]{0}', space=vmem, size = 0x1000, scoped, tag = 'input window, operand 0, single buffered']
    #allocation5 [shape = 's32[1]{0}', space=sflag, size = 0x4, scoped, tag = 'scoped memory for tpu_custom_call.1']
    #allocation6 [shape = 's32[1]{0}', space=sflag, size = 0x4, scoped, tag = 'scoped memory for tpu_custom_call.1']
    #allocation7 [shape = 'u8[1024]{0}', space=vmem, size = 0x400, scoped, tag = 'input window, operand 1, single buffered']
    #allocation8 [shape = 's32[1]{0}', space=sflag, size = 0x4, scoped, tag = 'scoped memory for tpu_custom_call.1']
    #allocation9 [shape = 'u8[4096]{0}', space=vmem, size = 0x1000, scoped, tag = 'input window, operand 2, single buffered']
    #allocation10 [shape = 'u8[512]{0}', space=smem, size = 0x200, scoped, tag = 'output window, operand 0, single buffered']
    %8 = vsyncpa [#allocation5], 0
    %9 = vsyncpa [#allocation8], 0
    %10 = vsyncpa [#allocation6], 0
    // Predicated region
    $region2: #{tpu_custom_call.1} parent=1 // pred_check
      _
    $region3: #{tpu_custom_call.1} parent=1 // pred_check_branch
      %12 = sbr.rel (0) target = $region5
    $region4: #{tpu_custom_call.1} parent=1 // pred_region
      %14 = vsyncadd [#allocation5], 0
      %s16 = sshll.u32 %s0, 4
      %s17 = int_to_ptr.hbm [resolvable:$true] %s16
      %s18 = sshll.u32 [#allocation4], 4
      %s19 = int_to_ptr.vmem [resolvable:$true] %s18
      %21 = dma.hbm_to_vmem [thread:$0]  %s17, 128, %s19, [#allocation5]
    $region5: #{tpu_custom_call.1} parent=1 // pred_fallthru
      _
    // Predicated region
    $region6: #{tpu_custom_call.1} parent=1 // pred_check
      _
    $region7: #{tpu_custom_call.1} parent=1 // pred_check_branch
      %23 = sbr.rel (0) target = $region9
    $region8: #{tpu_custom_call.1} parent=1 // pred_region
      %25 = vsyncadd [#allocation8], 0
      %s27 = sshll.u32 %s1, 4
      %s28 = int_to_ptr.hbm [resolvable:$true] %s27
      %s29 = sshll.u32 [#allocation7], 4
      %s30 = int_to_ptr.vmem [resolvable:$true] %s29
      %32 = dma.hbm_to_vmem [thread:$0]  %s28, 32, %s30, [#allocation8]
    $region9: #{tpu_custom_call.1} parent=1 // pred_fallthru
      _
    // Predicated region
    $region10: #{tpu_custom_call.1} parent=1 // pred_check
      _
    $region11: #{tpu_custom_call.1} parent=1 // pred_check_branch
      %34 = sbr.rel (0) target = $region13
    $region12: #{tpu_custom_call.1} parent=1 // pred_region
      %36 = vsyncadd [#allocation8], 0
      %s38 = sshll.u32 %s2, 4
      %s39 = int_to_ptr.hbm [resolvable:$true] %s38
      %s40 = sshll.u32 [#allocation9], 4
      %s41 = int_to_ptr.vmem [resolvable:$true] %s40
      %43 = dma.hbm_to_vmem [thread:$0]  %s39, 128, %s41, [#allocation8]
    $region13: #{tpu_custom_call.1} parent=1 // pred_fallthru
      _
    // Predicated region
    $region14: #{tpu_custom_call.1} parent=1 // pred_check
      _
    $region15: #{tpu_custom_call.1} parent=1 // pred_check_branch
      %45 = sbr.rel (0) target = $region17
    $region16: #{tpu_custom_call.1} parent=1 // pred_region
      %47 = dma.done [#allocation5], 128
    $region17: #{tpu_custom_call.1} parent=1 // pred_fallthru
      _
    // Predicated region
    $region18: #{tpu_custom_call.1} parent=1 // pred_check
      _
    $region19: #{tpu_custom_call.1} parent=1 // pred_check_branch
      %49 = sbr.rel (0) target = $region21
    $region20: #{tpu_custom_call.1} parent=1 // pred_region
      %51 = dma.done [#allocation8], 32
    $region21: #{tpu_custom_call.1} parent=1 // pred_fallthru
      _
    // Predicated region
    $region22: #{tpu_custom_call.1} parent=1 // pred_check
      _
    $region23: #{tpu_custom_call.1} parent=1 // pred_check_branch
      %53 = sbr.rel (0) target = $region25
    $region24: #{tpu_custom_call.1} parent=1 // pred_region
      %55 = dma.done [#allocation8], 128
    $region25: #{tpu_custom_call.1} parent=1 // pred_fallthru
      _
    %p56 = scmp.eq.s32.totalorder 0, 0
    // Predicated region
    $region26: #{tpu_custom_call.1} parent=1 // pred_check
      %p57 = pneg %p56
    $region27: #{tpu_custom_call.1} parent=1 // pred_check_branch
      %59 = sbr.rel (%p57) target = $region29
    $region28: #{tpu_custom_call.1} parent=1 // pred_region
      %vm60 = vcmask 523264
      %61 = vst.msk [vmem:[#allocation2] sm:$0xff] %vm60, 0.0
      %62 = vst [vmem:[#allocation3] sm:$0xff] 0.0
    $region29: #{tpu_custom_call.1} parent=1 // pred_fallthru
      _
    %v63 = vld [vmem:[#allocation9] sm:$0xff]
    %vm64 = vcmp.gt.f32.partialorder %v63, 0.5
    %v65 = vld [vmem:[#allocation4] sm:$0xff]
    %v66 = vld [vmem:[#allocation7] sm:$0x3]
    %v67 = vunpack.c.0.s8 %v66
    %v68 = vcvt.s32.f32 %v67
    %v69 = vmul.f32 %v68, 2.0
    %v70 = vsub.f32 1.0, %v69
    %v71 = vmul.f32 %v65, %v70
    %v72 = vmax.f32 %v71, 0.0
    %v73 = vand.u32 2147483647, %v71
    %v74 = vsub.f32 0.0, %v73
    %v75 = vmul.f32 %v74, 1.442695
    %v76 = vpow.pop %v75
    %v77 = vadd.f32 %v76, 1.0
    %v78 = vlog2.pop %v77
    %v79 = vmul.f32 %v78, 0.6931472
    %v80 = vadd.f32 %v72, %v79
    %v81 = vld [vmem:[#allocation2] sm:$0xff]
    %v82 = vsel %vm64, 1, 0
    %83 = vset.pattern.permute.xlu0 107
    %84 = vperm.xlu0 %83, %v82
    %v85 = vpop.permute.xlu0 %84
    %vm86 = vcmp.eq.s32.totalorder %v85, 1
    %v87 = vsel %vm86, %v80, 0.0
    %v88 = vadd.f32 %v81, %v87
    %vm89 = vcmask 523264
    %90 = vst.msk [vmem:[#allocation2] sm:$0xff] %vm89, %v88
    %92 = vrot.lane.b32.xlu0 %v63, 122
    %v93 = vpop.permute.xlu0 %92
    %v95 = vsub.f32 %v63, %v93
    %v96 = vmul.f32 %v95, %v95
    %vm97 = vcmask 23552
    %v98 = vsel %vm97, %v96, 0.0
    %99 = vadd.xlane.f32.xlu0 %v98
    %v100 = vpop.xlane.xlu0 %99
    %v101 = vrsqrt.pop %v100
    %v102 = vmul.f32 %v101, %v100
    %v103 = vmul.f32 %v102, %v101
    %v104 = vmul.f32 0.5, %v103
    %v105 = vsub.f32 1.5, %v104
    %v106 = vmul.f32 %v101, %v105
    %v107 = vmul.f32 %v100, %v106
    %vm108 = vcmp.eq.f32.partialorder %v100, inf
    %v109 = vsel %vm108, %v100, %v107
    %vm110 = vcmp.eq.f32.partialorder %v100, 0.0
    %v111 = vand.u32 %v100, 2147483648
    %v112 = vsel %vm110, %v111, %v109
    %113 = vrot.lane.b32.xlu0 %v63, 125
    %v114 = vpop.permute.xlu0 %113
    %v116 = vsub.f32 %v63, %v114
    %v117 = vmul.f32 %v116, %v116
    %119 = vrot.lane.b32.xlu0 %v117, 125
    %v120 = vpop.permute.xlu0 %119
    %v122 = vsel %vm97, %v120, 0.0
    %123 = vadd.xlane.f32.xlu0 %v122
    %v124 = vpop.xlane.xlu0 %123
    %v125 = vrsqrt.pop %v124
    %v126 = vmul.f32 %v125, %v124
    %v127 = vmul.f32 %v126, %v125
    %v128 = vmul.f32 0.5, %v127
    %v129 = vsub.f32 1.5, %v128
    %v130 = vmul.f32 %v125, %v129
    %v131 = vmul.f32 %v124, %v130
    %vm132 = vcmp.eq.f32.partialorder %v124, inf
    %v133 = vsel %vm132, %v124, %v131
    %vm134 = vcmp.eq.f32.partialorder %v124, 0.0
    %v135 = vand.u32 %v124, 2147483648
    %v136 = vsel %vm134, %v135, %v133
    %v137 = vlaneseq
    %v138 = vand.u32 %v137, 127
    %v139 = vcvt.s32.f32 %v138
    %140 = vset.pattern.permute.xlu0 101
    %141 = vperm.xlu0 %140, %v63
    %v142 = vpop.permute.xlu0 %141
    %vm144 = vcmp.eq.f32.partialorder %v139, %v142
    %v145 = vsel %vm144, 1, 0
    %v146 = vcvt.s32.f32 %v145
    %vm147 = vcmask 171080
    %v148 = vsel %vm147, %v63, -inf
    %149 = vmax.xlane.f32.xlu0 %v148
    %v150 = vpop.xlane.xlu0 %149
    %v151 = vsub.f32 %v63, %v150
    %v152 = vmul.f32 %v151, 1.442695
    %v153 = vpow.pop %v152
    %155 = vrot.lane.b32.xlu0 %v153, 119
    %v156 = vpop.permute.xlu0 %155
    %vm158 = vcmask 97280
    %v159 = vsel %vm158, %v156, 0.0
    %160 = vadd.xlane.f32.xlu0 %v159
    %v161 = vpop.xlane.xlu0 %160
    %v162 = vlog2.pop %v161
    %v163 = vmul.f32 %v162, 0.6931472
    %v164 = vadd.f32 %v150, %v163
    %166 = vrot.lane.b32.xlu0 %v146, 9
    %v167 = vpop.permute.xlu0 %166
    %v169 = vmul.f32 %v63, %v167
    %171 = vrot.lane.b32.xlu0 %v169, 119
    %v172 = vpop.permute.xlu0 %171
    %v174 = vsel %vm158, %v172, 0.0
    %175 = vadd.xlane.f32.xlu0 %v174
    %v176 = vpop.xlane.xlu0 %175
    %177 = vrot.lane.b32.xlu0 %v63, 119
    %v178 = vpop.permute.xlu0 %177
    %v180 = vsel %vm158, %v178, 0.0
    %181 = vadd.xlane.f32.xlu0 %v180
    %v182 = vpop.xlane.xlu0 %181
    %v183 = vmul.f32 %v176, 0.9
    %v184 = vsub.f32 %v164, %v183
    %v185 = vmul.f32 %v182, 0.008333334
    %v186 = vsub.f32 %v184, %v185
    %187 = vset.pattern.permute.xlu0 103
    %188 = vperm.xlu0 %187, %v63
    %v189 = vpop.permute.xlu0 %188
    %vm191 = vcmp.eq.f32.partialorder %v139, %v189
    %v192 = vsel %vm191, 1, 0
    %v193 = vcvt.s32.f32 %v192
    %vm194 = vcmask 433512
    %v195 = vsel %vm194, %v63, -inf
    %196 = vmax.xlane.f32.xlu0 %v195
    %v197 = vpop.xlane.xlu0 %196
    %v198 = vsub.f32 %v63, %v197
    %v199 = vmul.f32 %v198, 1.442695
    %v200 = vpow.pop %v199
    %202 = vrot.lane.b32.xlu0 %v200, 83
    %v203 = vpop.permute.xlu0 %202
    %vm205 = vcmask 64512
    %v206 = vsel %vm205, %v203, 0.0
    %207 = vadd.xlane.f32.xlu0 %v206
    %v208 = vpop.xlane.xlu0 %207
    %v209 = vlog2.pop %v208
    %v210 = vmul.f32 %v209, 0.6931472
    %v211 = vadd.f32 %v197, %v210
    %213 = vrot.lane.b32.xlu0 %v193, 45
    %v214 = vpop.permute.xlu0 %213
    %v216 = vmul.f32 %v63, %v214
    %218 = vrot.lane.b32.xlu0 %v216, 83
    %v219 = vpop.permute.xlu0 %218
    %v221 = vsel %vm205, %v219, 0.0
    %222 = vadd.xlane.f32.xlu0 %v221
    %v223 = vpop.xlane.xlu0 %222
    %v224 = vsub.f32 %v211, %v223
    %225 = vrot.lane.b32.xlu0 %v146, 21
    %v226 = vpop.permute.xlu0 %225
    %v228 = vmul.f32 %v63, %v226
    %230 = vrot.lane.b32.xlu0 %v228, 107
    %v231 = vpop.permute.xlu0 %230
    %v233 = vsel %vm158, %v231, 0.0
    %234 = vadd.xlane.f32.xlu0 %v233
    %v235 = vpop.xlane.xlu0 %234
    %v236 = vrcp.pop 0.2617994
    %v237 = vmul.f32 0.2617994, %v236
    %v238 = vsub.f32 1.0, %v237
    %v239 = vmul.f32 %v236, %v238
    %v240 = vadd.f32 %v236, %v239
    %vm241 = vweird.f32 %v236
    %v242 = vsel %vm241, %v236, %v240
    %v243 = vmul.f32 %v63, %v242
    %v244 = vsub.f32 %v235, %v243
    %vm245 = vcmp.gt.f32.partialorder %v244, 0.5
    %v246 = vsub.f32 %v244, 1.0
    %v247 = vsel %vm245, %v246, %v244
    %vm248 = vcmp.lt.f32.partialorder %v247, -0.5
    %v249 = vadd.f32 %v247, 1.0
    %v250 = vsel %vm248, %v249, %v247
    %251 = vset.pattern.permute.xlu0 0
    %252 = vperm.xlu0 %251, %v193
    %v253 = vpop.permute.xlu0 %252
    %v255 = vmul.f32 %v253, %v63
    %v256 = vadd.f32 %v255, 0.0
    %257 = vset.pattern.permute.xlu0 1
    %258 = vperm.xlu0 %257, %v193
    %v259 = vpop.permute.xlu0 %258
    %v261 = vmul.f32 %v259, %v63
    %263 = vrot.lane.b32.xlu0 %v261, 125
    %v264 = vpop.permute.xlu0 %263
    %v266 = vadd.f32 %v256, %v264
    %267 = vset.pattern.permute.xlu0 2
    %268 = vperm.xlu0 %267, %v193
    %v269 = vpop.permute.xlu0 %268
    %v271 = vmul.f32 %v269, %v63
    %273 = vrot.lane.b32.xlu0 %v271, 122
    %v274 = vpop.permute.xlu0 %273
    %v276 = vadd.f32 %v266, %v274
    %277 = vset.pattern.permute.xlu0 3
    %278 = vperm.xlu0 %277, %v193
    %v279 = vpop.permute.xlu0 %278
    %v281 = vmul.f32 %v279, %v63
    %283 = vrot.lane.b32.xlu0 %v281, 119
    %v284 = vpop.permute.xlu0 %283
    %v286 = vadd.f32 %v276, %v284
    %287 = vset.pattern.permute.xlu0 4
    %288 = vperm.xlu0 %287, %v193
    %v289 = vpop.permute.xlu0 %288
    %v291 = vmul.f32 %v289, %v63
    %293 = vrot.lane.b32.xlu0 %v291, 116
    %v294 = vpop.permute.xlu0 %293
    %v296 = vadd.f32 %v286, %v294
    %297 = vset.pattern.permute.xlu0 5
    %298 = vperm.xlu0 %297, %v193
    %v299 = vpop.permute.xlu0 %298
    %v301 = vmul.f32 %v299, %v63
    %303 = vrot.lane.b32.xlu0 %v301, 113
    %v304 = vpop.permute.xlu0 %303
    %v306 = vadd.f32 %v296, %v304
    %307 = vset.pattern.permute.xlu0 6
    %308 = vperm.xlu0 %307, %v193
    %v309 = vpop.permute.xlu0 %308
    %v311 = vmul.f32 %v309, %v63
    %313 = vrot.lane.b32.xlu0 %v311, 110
    %v314 = vpop.permute.xlu0 %313
    %v316 = vadd.f32 %v306, %v314
    %317 = vset.pattern.permute.xlu0 7
    %318 = vperm.xlu0 %317, %v193
    %v319 = vpop.permute.xlu0 %318
    %v321 = vmul.f32 %v319, %v63
    %323 = vrot.lane.b32.xlu0 %v321, 107
    %v324 = vpop.permute.xlu0 %323
    %v326 = vadd.f32 %v316, %v324
    %327 = vrot.lane.b32.xlu0 %v63, 77
    %v328 = vpop.permute.xlu0 %327
    %v330 = vsub.f32 %v326, %v328
    %331 = vrot.lane.b32.xlu0 %v146, 33
    %v332 = vpop.permute.xlu0 %331
    %v334 = vmul.f32 %v63, %v332
    %336 = vrot.lane.b32.xlu0 %v334, 95
    %v337 = vpop.permute.xlu0 %336
    %v339 = vsel %vm158, %v337, 0.0
    %340 = vadd.xlane.f32.xlu0 %v339
    %v341 = vpop.xlane.xlu0 %340
    %vm342 = vcmp.lt.s32.totalorder %v138, 0
    %v343 = vsub.s32 0, %v138
    %v344 = vsel %vm342, %v343, %v138
    %v345 = vshrl.u32 %v344, 2
    %v346 = vand.u32 %v344, 3
    %v347 = vsub.s32 0, %v346
    %v348 = vsel %vm342, %v347, %v346
    %vm349 = vcmp.ne.s32.totalorder %v348, 0
    %vm350 = vcmp.lt.s32.totalorder %v348, 0
    %vm351 = vmand %vm350, %vm349
    %v352 = vadd.s32 %v348, 4
    %v353 = vsel %vm351, %v352, %v348
    %vm354 = vcmp.lt.s32.totalorder %v353, 2
    %v355 = vsel %vm354, 1.0, -1.0
    %vm356 = vcmp.lt.s32.totalorder %v138, 4
    %v357 = vsel %vm356, 1.0, -1.0
    %v358 = vadd.s32 %v138, 1
    %vm359 = vcmp.lt.s32.totalorder %v358, 0
    %v360 = vsub.s32 0, %v358
    %v361 = vsel %vm359, %v360, %v358
    %v362 = vshrl.u32 %v361, 2
    %v363 = vand.u32 %v361, 3
    %v364 = vsub.s32 0, %v363
    %v365 = vsel %vm359, %v364, %v363
    %vm366 = vcmp.ne.s32.totalorder %v365, 0
    %vm367 = vcmp.lt.s32.totalorder %v365, 0
    %vm368 = vmand %vm367, %vm366
    %v369 = vadd.s32 %v365, 4
    %v370 = vsel %vm368, %v369, %v365
    %vm371 = vcmp.lt.s32.totalorder %v370, 2
    %v372 = vsel %vm371, 1.0, -1.0
    %v373 = vmul.f32 %v326, 0.5
    %375 = vset.pattern.permute.xlu0 77
    %376 = vperm.xlu0 %375, %v373
    %v377 = vpop.permute.xlu0 %376
    %v379 = vmul.f32 %v377, %v355
    %380 = vset.pattern.permute.xlu0 79
    %381 = vperm.xlu0 %380, %v373
    %v382 = vpop.permute.xlu0 %381
    %v384 = vmul.f32 %v382, %v357
    %385 = vset.pattern.permute.xlu0 78
    %386 = vperm.xlu0 %385, %v373
    %v387 = vpop.permute.xlu0 %386
    %v389 = vmul.f32 %v387, %v372
    %v390 = vand.u32 2147483647, %v341
    %vm391 = vcmp.le.f32.partialorder %v390, 0.7853982
    %vm392 = vcmp.lt.s32.totalorder %v341, 0
    %v393 = vand.u32 %v341, 2139095040
    %v394 = vshrl.u32 %v393, 23
    %v395 = vsub.s32 %v394, 127
    %v396 = vand.u32 2147483647, %v341
    %v397 = vand.u32 %v396, 8388607
    %v398 = vor.u32 %v397, 8388608
    %v399 = vsub.s32 0, %v398
    %v400 = vadd.s32 %v395, 1
    %vm401 = vcmp.gt.s32.totalorder %v400, 0
    %v402 = vsel %vm401, %v400, 0
    %v403 = vshrl.u32 %v402, 5
    %v404 = vand.u32 %v402, 31
    %v405 = vsub.s32 32, %v404
    %v406 = vshrl.u32 683565275, %v405
    %v407 = vshll.u32 683565275, %v404
    %v408 = vshrl.u32 2475754826, %v405
    %v409 = vor.u32 %v407, %v408
    %v410 = vshll.u32 2475754826, %v404
    %v411 = vshrl.u32 2131351028, %v405
    %v412 = vor.u32 %v410, %v411
    %v413 = vshll.u32 2131351028, %v404
    %v414 = vshrl.u32 2102212464, %v405
    %v415 = vor.u32 %v413, %v414
    %v416 = vshll.u32 2102212464, %v404
    %v417 = vshrl.u32 920167782, %v405
    %v418 = vor.u32 %v416, %v417
    %v419 = vshll.u32 920167782, %v404
    %v420 = vshrl.u32 1326507024, %v405
    %v421 = vor.u32 %v419, %v420
    %vm422 = vcmp.lt.s32.totalorder %v403, 1
    %vm423 = vcmp.lt.s32.totalorder %v403, 2
    %vm424 = vcmp.lt.s32.totalorder %v403, 3
    %vm425 = vcmp.lt.s32.totalorder %v403, 4
    %v426 = vsel %vm422, %v406, %v409
    %v427 = vsel %vm425, %v415, 2102212464
    %v428 = vsel %vm424, %v412, %v427
    %v429 = vsel %vm423, %v426, %v428
    %v430 = vsel %vm422, %v409, %v412
    %v431 = vsel %vm425, %v418, 920167782
    %v432 = vsel %vm424, %v415, %v431
    %v433 = vsel %vm423, %v430, %v432
    %v434 = vsel %vm422, %v412, %v415
    %v435 = vsel %vm425, %v421, 1326507024
    %v436 = vsel %vm424, %v418, %v435
    %v437 = vsel %vm423, %v434, %v436
    %v438 = vshll.u32 %v398, 8
    %v439 = vand.u32 %v438, 65535
    %v440 = vshrl.u32 %v438, 16
    %v441 = vand.u32 %v437, 65535
    %v442 = vshrl.u32 %v437, 16
    %v443 = vmul.u32 %v439, %v441
    %v444 = vmul.u32 %v439, %v442
    %v445 = vmul.u32 %v440, %v441
    %v446 = vmul.u32 %v440, %v442
    %v447 = vshll.u32 %v444, 16
    %v448 = vshrl.u32 %v444, 16
    %v449 = vshll.u32 %v445, 16
    %v450 = vshrl.u32 %v445, 16
    %vm451 = vc.u32 %v443, %v447
    %v452 = vsel %vm451, 1, 0
    %v453 = vadd.s32 %v443, %v447
    %v454 = vadd.s32 %v446, %v452
    %vm455 = vc.u32 %v453, %v449
    %v456 = vsel %vm455, 1, 0
    %v457 = vadd.s32 %v453, %v449
    %v458 = vadd.s32 %v454, %v456
    %v459 = vadd.s32 %v458, %v448
    %v460 = vadd.s32 %v459, %v450
    %v461 = vand.u32 %v438, 65535
    %v462 = vshrl.u32 %v438, 16
    %v463 = vand.u32 %v433, 65535
    %v464 = vshrl.u32 %v433, 16
    %v465 = vmul.u32 %v461, %v463
    %v466 = vmul.u32 %v461, %v464
    %v467 = vmul.u32 %v462, %v463
    %v468 = vmul.u32 %v462, %v464
    %v469 = vshll.u32 %v466, 16
    %v470 = vshrl.u32 %v466, 16
    %v471 = vshll.u32 %v467, 16
    %v472 = vshrl.u32 %v467, 16
    %vm473 = vc.u32 %v465, %v469
    %v474 = vsel %vm473, 1, 0
    %v475 = vadd.s32 %v465, %v469
    %v476 = vadd.s32 %v468, %v474
    %vm477 = vc.u32 %v475, %v471
    %v478 = vsel %vm477, 1, 0
    %v479 = vadd.s32 %v475, %v471
    %v480 = vadd.s32 %v476, %v478
    %v481 = vadd.s32 %v480, %v470
    %v482 = vadd.s32 %v481, %v472
    %v483 = vmul.u32 %v438, %v429
    %v484 = vadd.s32 %v460, %v479
    %vm485 = vc.u32 %v460, %v479
    %v486 = vadd.s32 %v482, 1
    %v487 = vsel %vm485, %v486, %v482
    %v488 = vadd.s32 %v483, %v487
    %v489 = vadd.s32 %v488, 536870912
    %v490 = vshrl.u32 %v489, 30
    %v491 = vshll.u32 %v490, 30
    %v492 = vsub.s32 %v488, %v491
    %vm493 = vcmp.lt.s32.totalorder %v492, 0
    %v494 = vsub.s32 0, %v492
    %v495 = vsel %vm493, %v494, %v492
    %v496 = vclz %v495
    %v497 = vsub.s32 %v496, 2
    %vm498 = vcmp.gt.s32.totalorder 0, %v497
    %v499 = vsel %vm498, 0, %v497
    %v500 = vsub.s32 32, %v499
    %v501 = vshll.u32 %v492, %v499
    %v502 = vshrl.u32 %v484, %v500
    %v503 = vor.u32 %v501, %v502
    %v504 = vsub.s32 4294967266, %v499
    %v505 = vadd.s32 %v504, 127
    %v506 = vshll.u32 %v505, 23
    %v507 = vor.u32 4788187, %v506
    %v508 = vand.u32 2147483647, %v507
    %v510 = vcvt.s32.f32 %v503
    %v511 = vmul.f32 %v510, %v508
    %v512 = vxor.u32 %v511, 2147483648
    %v513 = vsel %vm392, %v512, %v511
    %v514 = vsub.s32 4, %v490
    %v515 = vsel %vm392, %v514, %v490
    %v516 = vsel %vm391, %v341, %v513
    %v517 = vsel %vm391, 0, %v515
    %v518 = vmul.f32 %v516, %v516
    %v519 = vmul.f32 %v518, -0.001358992
    %v520 = vadd.f32 %v519, 0.041655596
    %v521 = vmul.f32 %v518, %v520
    %v522 = vadd.f32 %v521, -0.4999988
    %v523 = vmul.f32 %v518, %v522
    %v524 = vadd.f32 1.0, %v523
    %v525 = vmul.f32 %v516, %v516
    %v526 = vmul.f32 %v525, -0.00019511016
    %v527 = vadd.f32 %v526, 0.008332121
    %v528 = vmul.f32 %v525, %v527
    %v529 = vadd.f32 %v528, -0.16666654
    %v530 = vmul.f32 %v525, %v529
    %v531 = vadd.f32 %v530, 1.0
    %v532 = vmul.f32 %v531, %v516
    %vm533 = vweird.f32 %v341
    %v534 = vand.u32 %v517, 3
    %vm535 = vcmp.lt.s32.totalorder %v534, 2
    %vm536 = vcmp.eq.s32.totalorder %v534, 0
    %v537 = vxor.u32 %v532, 2147483648
    %v538 = vsel %vm536, %v524, %v537
    %vm539 = vcmp.eq.s32.totalorder %v534, 2
    %v540 = vxor.u32 %v524, 2147483648
    %v541 = vsel %vm539, %v540, %v532
    %v542 = vsel %vm535, %v538, %v541
    %v543 = vsel %vm533, nan, %v542
    %v544 = vand.u32 2147483647, %v341
    %vm545 = vcmp.le.f32.partialorder %v544, 0.7853982
    %vm546 = vcmp.lt.s32.totalorder %v341, 0
    %v547 = vand.u32 %v341, 2139095040
    %v548 = vshrl.u32 %v547, 23
    %v549 = vsub.s32 %v548, 127
    %v550 = vand.u32 2147483647, %v341
    %v551 = vand.u32 %v550, 8388607
    %v552 = vor.u32 %v551, 8388608
    %v553 = vsub.s32 0, %v552
    %v554 = vadd.s32 %v549, 1
    %vm555 = vcmp.gt.s32.totalorder %v554, 0
    %v556 = vsel %vm555, %v554, 0
    %v557 = vshrl.u32 %v556, 5
    %v558 = vand.u32 %v556, 31
    %v559 = vsub.s32 32, %v558
    %v560 = vshrl.u32 683565275, %v559
    %v561 = vshll.u32 683565275, %v558
    %v562 = vshrl.u32 2475754826, %v559
    %v563 = vor.u32 %v561, %v562
    %v564 = vshll.u32 2475754826, %v558
    %v565 = vshrl.u32 2131351028, %v559
    %v566 = vor.u32 %v564, %v565
    %v567 = vshll.u32 2131351028, %v558
    %v568 = vshrl.u32 2102212464, %v559
    %v569 = vor.u32 %v567, %v568
    %v570 = vshll.u32 2102212464, %v558
    %v571 = vshrl.u32 920167782, %v559
    %v572 = vor.u32 %v570, %v571
    %v573 = vshll.u32 920167782, %v558
    %v574 = vshrl.u32 1326507024, %v559
    %v575 = vor.u32 %v573, %v574
    %vm576 = vcmp.lt.s32.totalorder %v557, 1
    %vm577 = vcmp.lt.s32.totalorder %v557, 2
    %vm578 = vcmp.lt.s32.totalorder %v557, 3
    %vm579 = vcmp.lt.s32.totalorder %v557, 4
    %v580 = vsel %vm576, %v560, %v563
    %v581 = vsel %vm579, %v569, 2102212464
    %v582 = vsel %vm578, %v566, %v581
    %v583 = vsel %vm577, %v580, %v582
    %v584 = vsel %vm576, %v563, %v566
    %v585 = vsel %vm579, %v572, 920167782
    %v586 = vsel %vm578, %v569, %v585
    %v587 = vsel %vm577, %v584, %v586
    %v588 = vsel %vm576, %v566, %v569
    %v589 = vsel %vm579, %v575, 1326507024
    %v590 = vsel %vm578, %v572, %v589
    %v591 = vsel %vm577, %v588, %v590
    %v592 = vshll.u32 %v552, 8
    %v593 = vand.u32 %v592, 65535
    %v594 = vshrl.u32 %v592, 16
    %v595 = vand.u32 %v591, 65535
    %v596 = vshrl.u32 %v591, 16
    %v597 = vmul.u32 %v593, %v595
    %v598 = vmul.u32 %v593, %v596
    %v599 = vmul.u32 %v594, %v595
    %v600 = vmul.u32 %v594, %v596
    %v601 = vshll.u32 %v598, 16
    %v602 = vshrl.u32 %v598, 16
    %v603 = vshll.u32 %v599, 16
    %v604 = vshrl.u32 %v599, 16
    %vm605 = vc.u32 %v597, %v601
    %v606 = vsel %vm605, 1, 0
    %v607 = vadd.s32 %v597, %v601
    %v608 = vadd.s32 %v600, %v606
    %vm609 = vc.u32 %v607, %v603
    %v610 = vsel %vm609, 1, 0
    %v611 = vadd.s32 %v607, %v603
    %v612 = vadd.s32 %v608, %v610
    %v613 = vadd.s32 %v612, %v602
    %v614 = vadd.s32 %v613, %v604
    %v615 = vand.u32 %v592, 65535
    %v616 = vshrl.u32 %v592, 16
    %v617 = vand.u32 %v587, 65535
    %v618 = vshrl.u32 %v587, 16
    %v619 = vmul.u32 %v615, %v617
    %v620 = vmul.u32 %v615, %v618
    %v621 = vmul.u32 %v616, %v617
    %v622 = vmul.u32 %v616, %v618
    %v623 = vshll.u32 %v620, 16
    %v624 = vshrl.u32 %v620, 16
    %v625 = vshll.u32 %v621, 16
    %v626 = vshrl.u32 %v621, 16
    %vm627 = vc.u32 %v619, %v623
    %v628 = vsel %vm627, 1, 0
    %v629 = vadd.s32 %v619, %v623
    %v630 = vadd.s32 %v622, %v628
    %vm631 = vc.u32 %v629, %v625
    %v632 = vsel %vm631, 1, 0
    %v633 = vadd.s32 %v629, %v625
    %v634 = vadd.s32 %v630, %v632
    %v635 = vadd.s32 %v634, %v624
    %v636 = vadd.s32 %v635, %v626
    %v637 = vmul.u32 %v592, %v583
    %v638 = vadd.s32 %v614, %v633
    %vm639 = vc.u32 %v614, %v633
    %v640 = vadd.s32 %v636, 1
    %v641 = vsel %vm639, %v640, %v636
    %v642 = vadd.s32 %v637, %v641
    %v643 = vadd.s32 %v642, 536870912
    %v644 = vshrl.u32 %v643, 30
    %v645 = vshll.u32 %v644, 30
    %v646 = vsub.s32 %v642, %v645
    %vm647 = vcmp.lt.s32.totalorder %v646, 0
    %v648 = vsub.s32 0, %v646
    %v649 = vsel %vm647, %v648, %v646
    %v650 = vclz %v649
    %v651 = vsub.s32 %v650, 2
    %vm652 = vcmp.gt.s32.totalorder 0, %v651
    %v653 = vsel %vm652, 0, %v651
    %v654 = vsub.s32 32, %v653
    %v655 = vshll.u32 %v646, %v653
    %v656 = vshrl.u32 %v638, %v654
    %v657 = vor.u32 %v655, %v656
    %v658 = vsub.s32 4294967266, %v653
    %v659 = vadd.s32 %v658, 127
    %v660 = vshll.u32 %v659, 23
    %v661 = vor.u32 4788187, %v660
    %v662 = vand.u32 2147483647, %v661
    %v664 = vcvt.s32.f32 %v657
    %v665 = vmul.f32 %v664, %v662
    %v666 = vxor.u32 %v665, 2147483648
    %v667 = vsel %vm546, %v666, %v665
    %v668 = vsub.s32 4, %v644
    %v669 = vsel %vm546, %v668, %v644
    %v670 = vsel %vm545, %v341, %v667
    %v671 = vsel %vm545, 0, %v669
    %v672 = vmul.f32 %v670, %v670
    %v673 = vmul.f32 %v672, -0.001358992
    %v674 = vadd.f32 %v673, 0.041655596
    %v675 = vmul.f32 %v672, %v674
    %v676 = vadd.f32 %v675, -0.4999988
    %v677 = vmul.f32 %v672, %v676
    %v678 = vadd.f32 1.0, %v677
    %v679 = vmul.f32 %v670, %v670
    %v680 = vmul.f32 %v679, -0.00019511016
    %v681 = vadd.f32 %v680, 0.008332121
    %v682 = vmul.f32 %v679, %v681
    %v683 = vadd.f32 %v682, -0.16666654
    %v684 = vmul.f32 %v679, %v683
    %v685 = vadd.f32 %v684, 1.0
    %v686 = vmul.f32 %v685, %v670
    %vm687 = vweird.f32 %v341
    %v688 = vadd.s32 %v671, 3
    %v689 = vand.u32 %v688, 3
    %vm690 = vcmp.lt.s32.totalorder %v689, 2
    %vm691 = vcmp.eq.s32.totalorder %v689, 0
    %v692 = vxor.u32 %v686, 2147483648
    %v693 = vsel %vm691, %v678, %v692
    %vm694 = vcmp.eq.s32.totalorder %v689, 2
    %v695 = vxor.u32 %v678, 2147483648
    %v696 = vsel %vm694, %v695, %v686
    %v697 = vsel %vm690, %v693, %v696
    %v698 = vsel %vm687, nan, %v697
    %v699 = vmul.f32 %v543, %v379
    %v700 = vmul.f32 %v698, %v389
    %v701 = vadd.f32 %v699, %v700
    %702 = vset.pattern.permute.xlu0 0
    %703 = vperm.xlu0 %702, %v63
    %v704 = vpop.permute.xlu0 %703
    %v706 = vadd.f32 %v701, %v704
    %707 = vset.pattern.permute.xlu0 1
    %708 = vperm.xlu0 %707, %v63
    %v709 = vpop.permute.xlu0 %708
    %v711 = vadd.f32 %v384, %v709
    %v712 = vsub.f32 0.0, %v698
    %v713 = vmul.f32 %v712, %v379
    %v714 = vmul.f32 %v543, %v389
    %v715 = vadd.f32 %v713, %v714
    %716 = vset.pattern.permute.xlu0 2
    %717 = vperm.xlu0 %716, %v63
    %v718 = vpop.permute.xlu0 %717
    %v720 = vadd.f32 %v715, %v718
    %v721 = vmul.f32 %v63, 0.5
    %723 = vset.pattern.permute.xlu0 104
    %724 = vperm.xlu0 %723, %v721
    %v725 = vpop.permute.xlu0 %724
    %v727 = vmul.f32 %v725, %v355
    %728 = vset.pattern.permute.xlu0 106
    %729 = vperm.xlu0 %728, %v721
    %v730 = vpop.permute.xlu0 %729
    %v732 = vmul.f32 %v730, %v357
    %733 = vset.pattern.permute.xlu0 105
    %734 = vperm.xlu0 %733, %v721
    %v735 = vpop.permute.xlu0 %734
    %v737 = vmul.f32 %v735, %v372
    %v738 = vand.u32 2147483647, %v63
    %vm739 = vcmp.le.f32.partialorder %v738, 0.7853982
    %vm740 = vcmp.lt.s32.totalorder %v63, 0
    %v741 = vand.u32 %v63, 2139095040
    %v742 = vshrl.u32 %v741, 23
    %v743 = vsub.s32 %v742, 127
    %v744 = vand.u32 2147483647, %v63
    %v745 = vand.u32 %v744, 8388607
    %v746 = vor.u32 %v745, 8388608
    %v747 = vsub.s32 0, %v746
    %v748 = vadd.s32 %v743, 1
    %vm749 = vcmp.gt.s32.totalorder %v748, 0
    %v750 = vsel %vm749, %v748, 0
    %v751 = vshrl.u32 %v750, 5
    %v752 = vand.u32 %v750, 31
    %v753 = vsub.s32 32, %v752
    %v754 = vshrl.u32 683565275, %v753
    %v755 = vshll.u32 683565275, %v752
    %v756 = vshrl.u32 2475754826, %v753
    %v757 = vor.u32 %v755, %v756
    %v758 = vshll.u32 2475754826, %v752
    %v759 = vshrl.u32 2131351028, %v753
    %v760 = vor.u32 %v758, %v759
    %v761 = vshll.u32 2131351028, %v752
    %v762 = vshrl.u32 2102212464, %v753
    %v763 = vor.u32 %v761, %v762
    %v764 = vshll.u32 2102212464, %v752
    %v765 = vshrl.u32 920167782, %v753
    %v766 = vor.u32 %v764, %v765
    %v767 = vshll.u32 920167782, %v752
    %v768 = vshrl.u32 1326507024, %v753
    %v769 = vor.u32 %v767, %v768
    %vm770 = vcmp.lt.s32.totalorder %v751, 1
    %vm771 = vcmp.lt.s32.totalorder %v751, 2
    %vm772 = vcmp.lt.s32.totalorder %v751, 3
    %vm773 = vcmp.lt.s32.totalorder %v751, 4
    %v774 = vsel %vm770, %v754, %v757
    %v775 = vsel %vm773, %v763, 2102212464
    %v776 = vsel %vm772, %v760, %v775
    %v777 = vsel %vm771, %v774, %v776
    %v778 = vsel %vm770, %v757, %v760
    %v779 = vsel %vm773, %v766, 920167782
    %v780 = vsel %vm772, %v763, %v779
    %v781 = vsel %vm771, %v778, %v780
    %v782 = vsel %vm770, %v760, %v763
    %v783 = vsel %vm773, %v769, 1326507024
    %v784 = vsel %vm772, %v766, %v783
    %v785 = vsel %vm771, %v782, %v784
    %v786 = vshll.u32 %v746, 8
    %v787 = vand.u32 %v786, 65535
    %v788 = vshrl.u32 %v786, 16
    %v789 = vand.u32 %v785, 65535
    %v790 = vshrl.u32 %v785, 16
    %v791 = vmul.u32 %v787, %v789
    %v792 = vmul.u32 %v787, %v790
    %v793 = vmul.u32 %v788, %v789
    %v794 = vmul.u32 %v788, %v790
    %v795 = vshll.u32 %v792, 16
    %v796 = vshrl.u32 %v792, 16
    %v797 = vshll.u32 %v793, 16
    %v798 = vshrl.u32 %v793, 16
    %vm799 = vc.u32 %v791, %v795
    %v800 = vsel %vm799, 1, 0
    %v801 = vadd.s32 %v791, %v795
    %v802 = vadd.s32 %v794, %v800
    %vm803 = vc.u32 %v801, %v797
    %v804 = vsel %vm803, 1, 0
    %v805 = vadd.s32 %v801, %v797
    %v806 = vadd.s32 %v802, %v804
    %v807 = vadd.s32 %v806, %v796
    %v808 = vadd.s32 %v807, %v798
    %v809 = vand.u32 %v786, 65535
    %v810 = vshrl.u32 %v786, 16
    %v811 = vand.u32 %v781, 65535
    %v812 = vshrl.u32 %v781, 16
    %v813 = vmul.u32 %v809, %v811
    %v814 = vmul.u32 %v809, %v812
    %v815 = vmul.u32 %v810, %v811
    %v816 = vmul.u32 %v810, %v812
    %v817 = vshll.u32 %v814, 16
    %v818 = vshrl.u32 %v814, 16
    %v819 = vshll.u32 %v815, 16
    %v820 = vshrl.u32 %v815, 16
    %vm821 = vc.u32 %v813, %v817
    %v822 = vsel %vm821, 1, 0
    %v823 = vadd.s32 %v813, %v817
    %v824 = vadd.s32 %v816, %v822
    %vm825 = vc.u32 %v823, %v819
    %v826 = vsel %vm825, 1, 0
    %v827 = vadd.s32 %v823, %v819
    %v828 = vadd.s32 %v824, %v826
    %v829 = vadd.s32 %v828, %v818
    %v830 = vadd.s32 %v829, %v820
    %v831 = vmul.u32 %v786, %v777
    %v832 = vadd.s32 %v808, %v827
    %vm833 = vc.u32 %v808, %v827
    %v834 = vadd.s32 %v830, 1
    %v835 = vsel %vm833, %v834, %v830
    %v836 = vadd.s32 %v831, %v835
    %v837 = vadd.s32 %v836, 536870912
    %v838 = vshrl.u32 %v837, 30
    %v839 = vshll.u32 %v838, 30
    %v840 = vsub.s32 %v836, %v839
    %vm841 = vcmp.lt.s32.totalorder %v840, 0
    %v842 = vsub.s32 0, %v840
    %v843 = vsel %vm841, %v842, %v840
    %v844 = vclz %v843
    %v845 = vsub.s32 %v844, 2
    %vm846 = vcmp.gt.s32.totalorder 0, %v845
    %v847 = vsel %vm846, 0, %v845
    %v848 = vsub.s32 32, %v847
    %v849 = vshll.u32 %v840, %v847
    %v850 = vshrl.u32 %v832, %v848
    %v851 = vor.u32 %v849, %v850
    %v852 = vsub.s32 4294967266, %v847
    %v853 = vadd.s32 %v852, 127
    %v854 = vshll.u32 %v853, 23
    %v855 = vor.u32 4788187, %v854
    %v856 = vand.u32 2147483647, %v855
    %v858 = vcvt.s32.f32 %v851
    %v859 = vmul.f32 %v858, %v856
    %v860 = vxor.u32 %v859, 2147483648
    %v861 = vsel %vm740, %v860, %v859
    %v862 = vsub.s32 4, %v838
    %v863 = vsel %vm740, %v862, %v838
    %v864 = vsel %vm739, %v63, %v861
    %v865 = vsel %vm739, 0, %v863
    %v866 = vmul.f32 %v864, %v864
    %v867 = vmul.f32 %v866, -0.001358992
    %v868 = vadd.f32 %v867, 0.041655596
    %v869 = vmul.f32 %v866, %v868
    %v870 = vadd.f32 %v869, -0.4999988
    %v871 = vmul.f32 %v866, %v870
    %v872 = vadd.f32 1.0, %v871
    %v873 = vmul.f32 %v864, %v864
    %v874 = vmul.f32 %v873, -0.00019511016
    %v875 = vadd.f32 %v874, 0.008332121
    %v876 = vmul.f32 %v873, %v875
    %v877 = vadd.f32 %v876, -0.16666654
    %v878 = vmul.f32 %v873, %v877
    %v879 = vadd.f32 %v878, 1.0
    %v880 = vmul.f32 %v879, %v864
    %vm881 = vweird.f32 %v63
    %v882 = vand.u32 %v865, 3
    %vm883 = vcmp.lt.s32.totalorder %v882, 2
    %vm884 = vcmp.eq.s32.totalorder %v882, 0
    %v885 = vxor.u32 %v880, 2147483648
    %v886 = vsel %vm884, %v872, %v885
    %vm887 = vcmp.eq.s32.totalorder %v882, 2
    %v888 = vxor.u32 %v872, 2147483648
    %v889 = vsel %vm887, %v888, %v880
    %v890 = vsel %vm883, %v886, %v889
    %v891 = vsel %vm881, nan, %v890
    %v892 = vand.u32 2147483647, %v63
    %vm893 = vcmp.le.f32.partialorder %v892, 0.7853982
    %vm894 = vcmp.lt.s32.totalorder %v63, 0
    %v895 = vand.u32 %v63, 2139095040
    %v896 = vshrl.u32 %v895, 23
    %v897 = vsub.s32 %v896, 127
    %v898 = vand.u32 2147483647, %v63
    %v899 = vand.u32 %v898, 8388607
    %v900 = vor.u32 %v899, 8388608
    %v901 = vsub.s32 0, %v900
    %v902 = vadd.s32 %v897, 1
    %vm903 = vcmp.gt.s32.totalorder %v902, 0
    %v904 = vsel %vm903, %v902, 0
    %v905 = vshrl.u32 %v904, 5
    %v906 = vand.u32 %v904, 31
    %v907 = vsub.s32 32, %v906
    %v908 = vshrl.u32 683565275, %v907
    %v909 = vshll.u32 683565275, %v906
    %v910 = vshrl.u32 2475754826, %v907
    %v911 = vor.u32 %v909, %v910
    %v912 = vshll.u32 2475754826, %v906
    %v913 = vshrl.u32 2131351028, %v907
    %v914 = vor.u32 %v912, %v913
    %v915 = vshll.u32 2131351028, %v906
    %v916 = vshrl.u32 2102212464, %v907
    %v917 = vor.u32 %v915, %v916
    %v918 = vshll.u32 2102212464, %v906
    %v919 = vshrl.u32 920167782, %v907
    %v920 = vor.u32 %v918, %v919
    %v921 = vshll.u32 920167782, %v906
    %v922 = vshrl.u32 1326507024, %v907
    %v923 = vor.u32 %v921, %v922
    %vm924 = vcmp.lt.s32.totalorder %v905, 1
    %vm925 = vcmp.lt.s32.totalorder %v905, 2
    %vm926 = vcmp.lt.s32.totalorder %v905, 3
    %vm927 = vcmp.lt.s32.totalorder %v905, 4
    %v928 = vsel %vm924, %v908, %v911
    %v929 = vsel %vm927, %v917, 2102212464
    %v930 = vsel %vm926, %v914, %v929
    %v931 = vsel %vm925, %v928, %v930
    %v932 = vsel %vm924, %v911, %v914
    %v933 = vsel %vm927, %v920, 920167782
    %v934 = vsel %vm926, %v917, %v933
    %v935 = vsel %vm925, %v932, %v934
    %v936 = vsel %vm924, %v914, %v917
    %v937 = vsel %vm927, %v923, 1326507024
    %v938 = vsel %vm926, %v920, %v937
    %v939 = vsel %vm925, %v936, %v938
    %v940 = vshll.u32 %v900, 8
    %v941 = vand.u32 %v940, 65535
    %v942 = vshrl.u32 %v940, 16
    %v943 = vand.u32 %v939, 65535
    %v944 = vshrl.u32 %v939, 16
    %v945 = vmul.u32 %v941, %v943
    %v946 = vmul.u32 %v941, %v944
    %v947 = vmul.u32 %v942, %v943
    %v948 = vmul.u32 %v942, %v944
    %v949 = vshll.u32 %v946, 16
    %v950 = vshrl.u32 %v946, 16
    %v951 = vshll.u32 %v947, 16
    %v952 = vshrl.u32 %v947, 16
    %vm953 = vc.u32 %v945, %v949
    %v954 = vsel %vm953, 1, 0
    %v955 = vadd.s32 %v945, %v949
    %v956 = vadd.s32 %v948, %v954
    %vm957 = vc.u32 %v955, %v951
    %v958 = vsel %vm957, 1, 0
    %v959 = vadd.s32 %v955, %v951
    %v960 = vadd.s32 %v956, %v958
    %v961 = vadd.s32 %v960, %v950
    %v962 = vadd.s32 %v961, %v952
    %v963 = vand.u32 %v940, 65535
    %v964 = vshrl.u32 %v940, 16
    %v965 = vand.u32 %v935, 65535
    %v966 = vshrl.u32 %v935, 16
    %v967 = vmul.u32 %v963, %v965
    %v968 = vmul.u32 %v963, %v966
    %v969 = vmul.u32 %v964, %v965
    %v970 = vmul.u32 %v964, %v966
    %v971 = vshll.u32 %v968, 16
    %v972 = vshrl.u32 %v968, 16
    %v973 = vshll.u32 %v969, 16
    %v974 = vshrl.u32 %v969, 16
    %vm975 = vc.u32 %v967, %v971
    %v976 = vsel %vm975, 1, 0
    %v977 = vadd.s32 %v967, %v971
    %v978 = vadd.s32 %v970, %v976
    %vm979 = vc.u32 %v977, %v973
    %v980 = vsel %vm979, 1, 0
    %v981 = vadd.s32 %v977, %v973
    %v982 = vadd.s32 %v978, %v980
    %v983 = vadd.s32 %v982, %v972
    %v984 = vadd.s32 %v983, %v974
    %v985 = vmul.u32 %v940, %v931
    %v986 = vadd.s32 %v962, %v981
    %vm987 = vc.u32 %v962, %v981
    %v988 = vadd.s32 %v984, 1
    %v989 = vsel %vm987, %v988, %v984
    %v990 = vadd.s32 %v985, %v989
    %v991 = vadd.s32 %v990, 536870912
    %v992 = vshrl.u32 %v991, 30
    %v993 = vshll.u32 %v992, 30
    %v994 = vsub.s32 %v990, %v993
    %vm995 = vcmp.lt.s32.totalorder %v994, 0
    %v996 = vsub.s32 0, %v994
    %v997 = vsel %vm995, %v996, %v994
    %v998 = vclz %v997
    %v999 = vsub.s32 %v998, 2
    %vm1000 = vcmp.gt.s32.totalorder 0, %v999
    %v1001 = vsel %vm1000, 0, %v999
    %v1002 = vsub.s32 32, %v1001
    %v1003 = vshll.u32 %v994, %v1001
    %v1004 = vshrl.u32 %v986, %v1002
    %v1005 = vor.u32 %v1003, %v1004
    %v1006 = vsub.s32 4294967266, %v1001
    %v1007 = vadd.s32 %v1006, 127
    %v1008 = vshll.u32 %v1007, 23
    %v1009 = vor.u32 4788187, %v1008
    %v1010 = vand.u32 2147483647, %v1009
    %v1012 = vcvt.s32.f32 %v1005
    %v1013 = vmul.f32 %v1012, %v1010
    %v1014 = vxor.u32 %v1013, 2147483648
    %v1015 = vsel %vm894, %v1014, %v1013
    %v1016 = vsub.s32 4, %v992
    %v1017 = vsel %vm894, %v1016, %v992
    %v1018 = vsel %vm893, %v63, %v1015
    %v1019 = vsel %vm893, 0, %v1017
    %v1020 = vmul.f32 %v1018, %v1018
    %v1021 = vmul.f32 %v1020, -0.001358992
    %v1022 = vadd.f32 %v1021, 0.041655596
    %v1023 = vmul.f32 %v1020, %v1022
    %v1024 = vadd.f32 %v1023, -0.4999988
    %v1025 = vmul.f32 %v1020, %v1024
    %v1026 = vadd.f32 1.0, %v1025
    %v1027 = vmul.f32 %v1018, %v1018
    %v1028 = vmul.f32 %v1027, -0.00019511016
    %v1029 = vadd.f32 %v1028, 0.008332121
    %v1030 = vmul.f32 %v1027, %v1029
    %v1031 = vadd.f32 %v1030, -0.16666654
    %v1032 = vmul.f32 %v1027, %v1031
    %v1033 = vadd.f32 %v1032, 1.0
    %v1034 = vmul.f32 %v1033, %v1018
    %vm1035 = vweird.f32 %v63
    %v1036 = vadd.s32 %v1019, 3
    %v1037 = vand.u32 %v1036, 3
    %vm1038 = vcmp.lt.s32.totalorder %v1037, 2
    %vm1039 = vcmp.eq.s32.totalorder %v1037, 0
    %v1040 = vxor.u32 %v1034, 2147483648
    %v1041 = vsel %vm1039, %v1026, %v1040
    %vm1042 = vcmp.eq.s32.totalorder %v1037, 2
    %v1043 = vxor.u32 %v1026, 2147483648
    %v1044 = vsel %vm1042, %v1043, %v1034
    %v1045 = vsel %vm1038, %v1041, %v1044
    %v1046 = vsel %vm1035, nan, %v1045
    %1048 = vset.pattern.permute.xlu0 102
    %1049 = vperm.xlu0 %1048, %v891
    %v1050 = vpop.permute.xlu0 %1049
    %v1052 = vmul.f32 %v1050, %v727
    %1054 = vset.pattern.permute.xlu0 102
    %1055 = vperm.xlu0 %1054, %v1046
    %v1056 = vpop.permute.xlu0 %1055
    %v1058 = vmul.f32 %v1056, %v737
    %v1059 = vadd.f32 %v1052, %v1058
    %1060 = vset.pattern.permute.xlu0 6
    %1061 = vperm.xlu0 %1060, %v63
    %v1062 = vpop.permute.xlu0 %1061
    %v1064 = vadd.f32 %v1059, %v1062
    %1065 = vset.pattern.permute.xlu0 7
    %1066 = vperm.xlu0 %1065, %v63
    %v1067 = vpop.permute.xlu0 %1066
    %v1069 = vadd.f32 %v732, %v1067
    %v1070 = vsub.f32 0.0, %v1046
    %1072 = vset.pattern.permute.xlu0 102
    %1073 = vperm.xlu0 %1072, %v1070
    %v1074 = vpop.permute.xlu0 %1073
    %v1076 = vmul.f32 %v1074, %v727
    %v1077 = vmul.f32 %v1050, %v737
    %v1078 = vadd.f32 %v1076, %v1077
    %1079 = vset.pattern.permute.xlu0 8
    %1080 = vperm.xlu0 %1079, %v63
    %v1081 = vpop.permute.xlu0 %1080
    %v1083 = vadd.f32 %v1078, %v1081
    %v1084 = vsub.f32 %v706, %v1064
    %v1085 = vand.u32 2147483647, %v1084
    %v1086 = vmin.f32 %v1085, 1.0
    %v1087 = vmul.f32 %v1086, 0.5
    %v1088 = vmul.f32 %v1087, %v1086
    %v1089 = vsub.f32 %v1085, %v1086
    %v1090 = vadd.f32 %v1088, %v1089
    %v1091 = vsub.f32 %v711, %v1069
    %v1092 = vand.u32 2147483647, %v1091
    %v1093 = vmin.f32 %v1092, 1.0
    %v1094 = vmul.f32 %v1093, 0.5
    %v1095 = vmul.f32 %v1094, %v1093
    %v1096 = vsub.f32 %v1092, %v1093
    %v1097 = vadd.f32 %v1095, %v1096
    %v1098 = vadd.f32 %v1090, %v1097
    %v1099 = vsub.f32 %v720, %v1083
    %v1100 = vand.u32 2147483647, %v1099
    %v1101 = vmin.f32 %v1100, 1.0
    %v1102 = vmul.f32 %v1101, 0.5
    %v1103 = vmul.f32 %v1102, %v1101
    %v1104 = vsub.f32 %v1100, %v1101
    %v1105 = vadd.f32 %v1103, %v1104
    %v1106 = vadd.f32 %v1098, %v1105
    %v1107 = vld [vmem:[#allocation3] sm:$0xff]
    %v1108 = vcvt.s32.f32 %v82
    %1110 = vrot.lane.b32.xlu0 %v1108, 21
    %v1111 = vpop.permute.xlu0 %1110
    %v1113 = vadd.f32 %v1107, %v1111
    %vm1114 = vcmask 7168
    %1115 = vst.msk [vmem:[#allocation3] sm:$0xff] %vm1114, %v1113
    %v1116 = vld [vmem:[#allocation3] sm:$0xff]
    %v1117 = vsel %vm64, %v112, 0.0
    %1119 = vrot.lane.b32.xlu0 %v1117, 22
    %v1120 = vpop.permute.xlu0 %1119
    %v1122 = vadd.f32 %v1116, %v1120
    %vm1123 = vcmask 15368
    %1124 = vst.msk [vmem:[#allocation3] sm:$0xff] %vm1123, %v1122
    %v1125 = vld [vmem:[#allocation3] sm:$0xff]
    %v1126 = vsel %vm64, %v136, 0.0
    %1128 = vrot.lane.b32.xlu0 %v1126, 23
    %v1129 = vpop.permute.xlu0 %1128
    %v1131 = vadd.f32 %v1125, %v1129
    %vm1132 = vcmask 23568
    %1133 = vst.msk [vmem:[#allocation3] sm:$0xff] %vm1132, %v1131
    %v1134 = vld [vmem:[#allocation3] sm:$0xff]
    %v1135 = vsel %vm64, %v186, 0.0
    %1137 = vrot.lane.b32.xlu0 %v1135, 24
    %v1138 = vpop.permute.xlu0 %1137
    %v1140 = vadd.f32 %v1134, %v1138
    %vm1141 = vcmask 31768
    %1142 = vst.msk [vmem:[#allocation3] sm:$0xff] %vm1141, %v1140
    %v1143 = vld [vmem:[#allocation3] sm:$0xff]
    %v1144 = vsel %vm64, %v224, 0.0
    %1146 = vrot.lane.b32.xlu0 %v1144, 25
    %v1147 = vpop.permute.xlu0 %1146
    %v1149 = vadd.f32 %v1143, %v1147
    %vm1150 = vcmask 39968
    %1151 = vst.msk [vmem:[#allocation3] sm:$0xff] %vm1150, %v1149
    %v1152 = vld [vmem:[#allocation3] sm:$0xff]
    %v1153 = vand.u32 2147483647, %v250
    %v1154 = vmin.f32 %v1153, 1.0
    %v1155 = vmul.f32 %v1154, 0.5
    %v1156 = vmul.f32 %v1155, %v1154
    %v1157 = vsub.f32 %v1153, %v1154
    %v1158 = vadd.f32 %v1156, %v1157
    %1160 = vrot.lane.b32.xlu0 %v1158, 5
    %v1161 = vpop.permute.xlu0 %1160
    %v1163 = vsel %vm64, %v1161, 0.0
    %1165 = vrot.lane.b32.xlu0 %v1163, 26
    %v1166 = vpop.permute.xlu0 %1165
    %v1168 = vadd.f32 %v1152, %v1166
    %vm1169 = vcmask 48168
    %1170 = vst.msk [vmem:[#allocation3] sm:$0xff] %vm1169, %v1168
    %v1171 = vld [vmem:[#allocation3] sm:$0xff]
    %v1172 = vand.u32 2147483647, %v330
    %v1173 = vmin.f32 %v1172, 1.0
    %v1174 = vmul.f32 %v1173, 0.5
    %v1175 = vmul.f32 %v1174, %v1173
    %v1176 = vsub.f32 %v1172, %v1173
    %v1177 = vadd.f32 %v1175, %v1176
    %v1178 = vsel %vm86, %v1177, 0.0
    %1180 = vrot.lane.b32.xlu0 %v1178, 83
    %v1181 = vpop.permute.xlu0 %1180
    %v1183 = vadd.f32 %v1171, %v1181
    %vm1184 = vcmask 89152
    %1185 = vst.msk [vmem:[#allocation3] sm:$0xff] %vm1184, %v1183
    %v1186 = vld [vmem:[#allocation3] sm:$0xff]
    %v1187 = vsel %vm86, %v1106, 0.0
    %1189 = vrot.lane.b32.xlu0 %v1187, 16
    %v1190 = vpop.permute.xlu0 %1189
    %v1192 = vadd.f32 %v1186, %v1190
    %vm1193 = vcmask 195712
    %1194 = vst.msk [vmem:[#allocation3] sm:$0xff] %vm1193, %v1192
    // Predicated region
    $region30: #{tpu_custom_call.1} parent=1 // pred_check
      %p1195 = pneg %p56
    $region31: #{tpu_custom_call.1} parent=1 // pred_check_branch
      %1197 = sbr.rel (%p1195) target = $region33
    $region32: #{tpu_custom_call.1} parent=1 // pred_region
      %v1198 = vld [vmem:[#allocation3] sm:$0xff]
      %v1199 = vsel %vm1114, %v1198, 0.0
      %1200 = vadd.xlane.f32.xlu0 %v1199
      %v1201 = vpop.xlane.xlu0 %1200
      %v1202 = vrot.slane %v1201, 4
      %v1203 = vadd.f32 %v1201, %v1202
      %v1204 = vrot.slane %v1203, 2
      %v1205 = vadd.f32 %v1203, %v1204
      %v1206 = vrot.slane %v1205, 1
      %v1207 = vadd.f32 %v1205, %v1206
      %s1208 = vtos %v1207
      %s1209 = smax.f32 %s1208, 1.0
      %v1210 = vstv %s1209
      %v1211 = vrcp.pop %v1210
      %v1212 = vmul.f32 %v1210, %v1211
      %v1213 = vsub.f32 1.0, %v1212
      %v1214 = vmul.f32 %v1211, %v1213
      %v1215 = vadd.f32 %v1211, %v1214
      %vm1216 = vweird.f32 %v1210
      %vm1217 = vweird.f32 %v1211
      %vm1218 = vmor %vm1216, %vm1217
      %v1219 = vsel %vm1218, %v1211, %v1215
      %v1220 = vand.u32 2147483647, %v1210
      %vm1221 = vcmp.eq.f32.partialorder %v1220, 8.507059e+37
      %v1222 = vand.u32 %v1210, 2147483648
      %v1223 = vor.u32 1.1754944e-38, %v1222
      %v1224 = vsel %vm1221, %v1223, %v1219
      %s1225 = vtos %v1224
      %v1226 = vld [vmem:[#allocation2] sm:$0xff]
      %v1227 = vsel %vm89, %v1226, 0.0
      %1228 = vadd.xlane.f32.xlu0 %v1227
      %v1229 = vpop.xlane.xlu0 %1228
      %v1230 = vrot.slane %v1229, 4
      %v1231 = vadd.f32 %v1229, %v1230
      %v1232 = vrot.slane %v1231, 2
      %v1233 = vadd.f32 %v1231, %v1232
      %v1234 = vrot.slane %v1233, 1
      %v1235 = vadd.f32 %v1233, %v1234
      %s1236 = vtos %v1235
      %v1237 = vrcp.pop 64.0
      %v1238 = vmul.f32 64.0, %v1237
      %v1239 = vsub.f32 1.0, %v1238
      %v1240 = vmul.f32 %v1237, %v1239
      %v1241 = vadd.f32 %v1237, %v1240
      %vm1242 = vweird.f32 %v1237
      %v1243 = vsel %vm1242, %v1237, %v1241
      %s1244 = vtos %v1243
      %s1245 = smul.f32 %s1225, %s1244
      %s1246 = smul.f32 %s1236, %s1245
      %1248 = vrot.lane.b32.xlu0 %v1198, 127
      %v1249 = vpop.permute.xlu0 %1248
      %v1251 = vsel %vm1114, %v1249, 0.0
      %1252 = vadd.xlane.f32.xlu0 %v1251
      %v1253 = vpop.xlane.xlu0 %1252
      %v1254 = vrot.slane %v1253, 4
      %v1255 = vadd.f32 %v1253, %v1254
      %v1256 = vrot.slane %v1255, 2
      %v1257 = vadd.f32 %v1255, %v1256
      %v1258 = vrot.slane %v1257, 1
      %v1259 = vadd.f32 %v1257, %v1258
      %s1260 = vtos %v1259
      %s1261 = smul.f32 %s1260, %s1225
      %1262 = vrot.lane.b32.xlu0 %v1198, 126
      %v1263 = vpop.permute.xlu0 %1262
      %v1265 = vsel %vm1114, %v1263, 0.0
      %1266 = vadd.xlane.f32.xlu0 %v1265
      %v1267 = vpop.xlane.xlu0 %1266
      %v1268 = vrot.slane %v1267, 4
      %v1269 = vadd.f32 %v1267, %v1268
      %v1270 = vrot.slane %v1269, 2
      %v1271 = vadd.f32 %v1269, %v1270
      %v1272 = vrot.slane %v1271, 1
      %v1273 = vadd.f32 %v1271, %v1272
      %s1274 = vtos %v1273
      %s1275 = smul.f32 %s1274, %s1225
      %1276 = vrot.lane.b32.xlu0 %v1198, 125
      %v1277 = vpop.permute.xlu0 %1276
      %v1279 = vsel %vm1114, %v1277, 0.0
      %1280 = vadd.xlane.f32.xlu0 %v1279
      %v1281 = vpop.xlane.xlu0 %1280
      %v1282 = vrot.slane %v1281, 4
      %v1283 = vadd.f32 %v1281, %v1282
      %v1284 = vrot.slane %v1283, 2
      %v1285 = vadd.f32 %v1283, %v1284
      %v1286 = vrot.slane %v1285, 1
      %v1287 = vadd.f32 %v1285, %v1286
      %s1288 = vtos %v1287
      %s1289 = smul.f32 %s1288, %s1225
      %1290 = vrot.lane.b32.xlu0 %v1198, 124
      %v1291 = vpop.permute.xlu0 %1290
      %v1293 = vsel %vm1114, %v1291, 0.0
      %1294 = vadd.xlane.f32.xlu0 %v1293
      %v1295 = vpop.xlane.xlu0 %1294
      %v1296 = vrot.slane %v1295, 4
      %v1297 = vadd.f32 %v1295, %v1296
      %v1298 = vrot.slane %v1297, 2
      %v1299 = vadd.f32 %v1297, %v1298
      %v1300 = vrot.slane %v1299, 1
      %v1301 = vadd.f32 %v1299, %v1300
      %s1302 = vtos %v1301
      %s1303 = smul.f32 %s1302, %s1225
      %1304 = vrot.lane.b32.xlu0 %v1198, 123
      %v1305 = vpop.permute.xlu0 %1304
      %v1307 = vsel %vm1114, %v1305, 0.0
      %1308 = vadd.xlane.f32.xlu0 %v1307
      %v1309 = vpop.xlane.xlu0 %1308
      %v1310 = vrot.slane %v1309, 4
      %v1311 = vadd.f32 %v1309, %v1310
      %v1312 = vrot.slane %v1311, 2
      %v1313 = vadd.f32 %v1311, %v1312
      %v1314 = vrot.slane %v1313, 1
      %v1315 = vadd.f32 %v1313, %v1314
      %s1316 = vtos %v1315
      %s1317 = smul.f32 %s1316, %s1225
      %1318 = vrot.lane.b32.xlu0 %v1198, 120
      %v1319 = vpop.permute.xlu0 %1318
      %v1321 = vsel %vm97, %v1319, 0.0
      %1322 = vadd.xlane.f32.xlu0 %v1321
      %v1323 = vpop.xlane.xlu0 %1322
      %v1324 = vrot.slane %v1323, 4
      %v1325 = vadd.f32 %v1323, %v1324
      %v1326 = vrot.slane %v1325, 2
      %v1327 = vadd.f32 %v1325, %v1326
      %v1328 = vrot.slane %v1327, 1
      %v1329 = vadd.f32 %v1327, %v1328
      %s1330 = vtos %v1329
      %v1331 = vrcp.pop 3.0
      %v1332 = vmul.f32 3.0, %v1331
      %v1333 = vsub.f32 1.0, %v1332
      %v1334 = vmul.f32 %v1331, %v1333
      %v1335 = vadd.f32 %v1331, %v1334
      %vm1336 = vweird.f32 %v1331
      %v1337 = vsel %vm1336, %v1331, %v1335
      %s1338 = vtos %v1337
      %s1339 = smul.f32 %s1225, %s1338
      %s1340 = smul.f32 %s1330, %s1339
      %1341 = vrot.lane.b32.xlu0 %v1198, 112
      %v1342 = vpop.permute.xlu0 %1341
      %v1344 = vsel %vm205, %v1342, 0.0
      %1345 = vadd.xlane.f32.xlu0 %v1344
      %v1346 = vpop.xlane.xlu0 %1345
      %v1347 = vrot.slane %v1346, 4
      %v1348 = vadd.f32 %v1346, %v1347
      %v1349 = vrot.slane %v1348, 2
      %v1350 = vadd.f32 %v1348, %v1349
      %v1351 = vrot.slane %v1350, 1
      %v1352 = vadd.f32 %v1350, %v1351
      %s1353 = vtos %v1352
      %v1354 = vrcp.pop 24.0
      %v1355 = vmul.f32 24.0, %v1354
      %v1356 = vsub.f32 1.0, %v1355
      %v1357 = vmul.f32 %v1354, %v1356
      %v1358 = vadd.f32 %v1354, %v1357
      %vm1359 = vweird.f32 %v1354
      %v1360 = vsel %vm1359, %v1354, %v1358
      %s1361 = vtos %v1360
      %s1362 = smul.f32 %s1225, %s1361
      %s1363 = smul.f32 %s1353, %s1362
      %s1364 = smul.f32 %s1261, 0.5
      %s1365 = sadd.f32 %s1246, %s1364
      %s1366 = sadd.f32 %s1365, %s1275
      %s1367 = sadd.f32 %s1366, %s1289
      %s1368 = sadd.f32 %s1367, %s1303
      %s1369 = smul.f32 %s1317, 10.0
      %s1370 = sadd.f32 %s1368, %s1369
      %s1371 = smul.f32 %s1340, 20.0
      %s1372 = sadd.f32 %s1370, %s1371
      %s1373 = sadd.f32 %s1372, %s1363
      %s1374 = scalar_lea.smem [#allocation10], 0
      %1375 = sst [smem:[%s1374]] %s1373
      %s1376 = scalar_lea.smem [#allocation10], 1
      %1377 = sst [smem:[%s1376]] %s1246
      %s1378 = scalar_lea.smem [#allocation10], 2
      %1379 = sst [smem:[%s1378]] %s1261
      %s1380 = scalar_lea.smem [#allocation10], 3
      %1381 = sst [smem:[%s1380]] %s1289
      %s1382 = scalar_lea.smem [#allocation10], 4
      %1383 = sst [smem:[%s1382]] %s1303
      %s1384 = scalar_lea.smem [#allocation10], 5
      %1385 = sst [smem:[%s1384]] %s1317
      %s1386 = scalar_lea.smem [#allocation10], 6
      %1387 = sst [smem:[%s1386]] %s1340
      %s1388 = scalar_lea.smem [#allocation10], 7
      %1389 = sst [smem:[%s1388]] %s1275
      %s1390 = scalar_lea.smem [#allocation10], 8
      %1391 = sst [smem:[%s1390]] %s1363
      %s1392 = scalar_lea.smem [#allocation10], 9
      %1393 = sst [smem:[%s1392]] 0.0
      %s1394 = scalar_lea.smem [#allocation10], 10
      %1395 = sst [smem:[%s1394]] 0.0
      %s1396 = scalar_lea.smem [#allocation10], 11
      %1397 = sst [smem:[%s1396]] 0.0
      %s1398 = scalar_lea.smem [#allocation10], 12
      %1399 = sst [smem:[%s1398]] 0.0
      %s1400 = scalar_lea.smem [#allocation10], 13
      %1401 = sst [smem:[%s1400]] 0.0
      %s1402 = scalar_lea.smem [#allocation10], 14
      %1403 = sst [smem:[%s1402]] 0.0
      %s1404 = scalar_lea.smem [#allocation10], 15
      %1405 = sst [smem:[%s1404]] 0.0
    $region33: #{tpu_custom_call.1} parent=1 // pred_fallthru
      _
    // Predicated region
    $region34: #{tpu_custom_call.1} parent=1 // pred_check
      _
    $region35: #{tpu_custom_call.1} parent=1 // pred_check_branch
      %1407 = sbr.rel (0) target = $region37
    $region36: #{tpu_custom_call.1} parent=1 // pred_region
      %1409 = vsyncadd [#allocation6], 0
      %s1411 = sshll.u32 %s3, 4
      %s1412 = int_to_ptr.hbm [resolvable:$true] %s1411
      %1414 = dma.smem_to_hbm [#allocation10], 16, %s1412, [#allocation6]
    $region37: #{tpu_custom_call.1} parent=1 // pred_fallthru
      _
    // Predicated region
    $region38: #{tpu_custom_call.1} parent=1 // pred_check
      _
    $region39: #{tpu_custom_call.1} parent=1 // pred_check_branch
      %1416 = sbr.rel (0) target = $region41
    $region40: #{tpu_custom_call.1} parent=1 // pred_region
      %1418 = dma.done [#allocation6], 16
    $region41: #{tpu_custom_call.1} parent=1 // pred_fallthru
      _
    %1419 = sfence
    %1420 = vsyncpa [#allocation5], 1
    %1421 = vsyncpa [#allocation8], 1
    %1422 = vsyncpa [#allocation6], 1

</llo_original>
